<compile_context>
chip_gen: v7x
topology: tpu7x:2x2x1
jax: 0.10.0
libtpu: 0.0.40
codegen_flags: <defaults>
</compile_context>

<pallas_src>
import jax
import jax.numpy as jnp
from jax.experimental import pallas as pl
from jax.experimental.pallas import tpu as pltpu


# ----------------------------- in-kernel helpers ---------------------------

_HIGHEST = jax.lax.Precision.HIGHEST


def _leaky(a):
    return jnp.where(a >= 0, a, 0.1 * a)


# ----------------------------- Pallas kernels ------------------------------

def _process_kernel(xr_ref, xi_ref, w1_ref, b1_ref, w2_ref, b2_ref,
                    outr_ref, outi_ref):
    """processReal/processImag fused: one (2C,T) tile, block-diag weights.

    conv1x1 -> LeakyReLU(0.1) -> conv1x1, both branches in a single MXU dot
    per layer (K = 2C).  Contraction kept at HIGHEST precision so the f32
    result holds the 1e-4 reference tolerance (no single-pass bf16).
    """
    c = xr_ref.shape[0]
    x2 = jnp.concatenate([xr_ref[...], xi_ref[...]], axis=0).astype(jnp.float32)
    h = jnp.dot(w1_ref[...], x2,
                preferred_element_type=jnp.float32, precision=_HIGHEST)
    h = _leaky(h + b1_ref[...])
    y = jnp.dot(w2_ref[...], h,
                preferred_element_type=jnp.float32, precision=_HIGHEST)
    y = y + b2_ref[...]
    outr_ref[...] = y[:c].astype(outr_ref.dtype)
    outi_ref[...] = y[c:].astype(outi_ref.dtype)


def _output_kernel(y_ref, res_ref, wo_ref, bo_ref, out_ref):
    """self.output (conv1x1) + residual add; residual buffer aliased to out."""
    y = jnp.dot(wo_ref[...], y_ref[...].astype(jnp.float32),
                preferred_element_type=jnp.float32, precision=_HIGHEST)
    y = y + bo_ref[...]
    out_ref[...] = (y + res_ref[...].astype(jnp.float32)).astype(out_ref.dtype)


# ----------------------------- wrappers ------------------------------------

def _pick_tile(m, rows, n_row_bufs, vmem_budget_bytes=6 << 20,
               min_grid=4, max_tile=32768):
    """Lane tile (multiple of 128) for the pixel axis.

    - Stays under a VMEM budget for the double-buffered row tiles (fits the
      32 MiB scoped-VMEM default on every generation, incl. v7x's 64 MiB VMEM).
    - Forces >= `min_grid` grid steps whenever the pixel extent allows it, so
      the auto-pipeline can overlap DMA with compute and the "parallel" axis
      can shard across v7x's two TensorCores.
    """
    per_lane = n_row_bufs * 2 * rows * 4          # bytes per pixel column (f32, dbl-buf)
    cap = (vmem_budget_bytes // per_lane) // 128 * 128
    cap = int(max(128, min(cap, max_tile)))
    tn_for_grid = max(128, (m // min_grid) // 128 * 128)
    return int(min(cap, tn_for_grid))


def _blockdiag(a, b):
    c = a.shape[0]
    z = jnp.zeros((c, c), a.dtype)
    return jnp.concatenate(
        [jnp.concatenate([a, z], axis=1),
         jnp.concatenate([z, b], axis=1)], axis=0)


def _process_pallas(xr, xi, p):
    """xr, xi: (C, M) lane-dense.  Returns processed (C, M) real/imag parts."""
    c, m = xr.shape
    tn = _pick_tile(m, rows=c, n_row_bufs=4)
    row_spec = pl.BlockSpec((c, tn), lambda i: (0, i))
    w_spec = pl.BlockSpec((2 * c, 2 * c), lambda i: (0, 0))   # resident weights
    b_spec = pl.BlockSpec((2 * c, 1), lambda i: (0, 0))

    w1 = _blockdiag(p["w1r"], p["w1i"])
    b1 = jnp.concatenate([p["b1r"], p["b1i"]], axis=0)
    w2 = _blockdiag(p["w2r"], p["w2i"])
    b2 = jnp.concatenate([p["b2r"], p["b2i"]], axis=0)

    outr, outi = pl.pallas_call(
        _process_kernel,
        out_shape=(jax.ShapeDtypeStruct((c, m), xr.dtype),
                   jax.ShapeDtypeStruct((c, m), xi.dtype)),
        grid=(pl.cdiv(m, tn),),
        in_specs=[row_spec, row_spec, w_spec, b_spec, w_spec, b_spec],
        out_specs=(row_spec, row_spec),
        compiler_params=pltpu.CompilerParams(
            dimension_semantics=("parallel",)),
    )(xr, xi, w1, b1, w2, b2)
    return outr, outi


def _output_pallas(y, res, p):
    """y, res: (C, M).  conv1x1(y) + res; res buffer aliased to the output."""
    c, m = y.shape
    tn = _pick_tile(m, rows=c, n_row_bufs=3)
    row_spec = pl.BlockSpec((c, tn), lambda i: (0, i))
    w_spec = pl.BlockSpec((c, c), lambda i: (0, 0))
    b_spec = pl.BlockSpec((c, 1), lambda i: (0, 0))
    return pl.pallas_call(
        _output_kernel,
        out_shape=jax.ShapeDtypeStruct((c, m), y.dtype),
        grid=(pl.cdiv(m, tn),),
        in_specs=[row_spec, row_spec, w_spec, b_spec],
        out_specs=row_spec,
        input_output_aliases={1: 0},            # res (kernel-local copy) -> out
        compiler_params=pltpu.CompilerParams(
            dimension_semantics=("parallel",)),
    )(y, res, p["wo"], p["bo"])


def _shift_cnhw(a, shift_pixel):
    """torch.chunk(dim=1) + per-chunk rolls, in the (C, N, H, W) layout
    (channels = axis 0, H = axis 2, W = axis 3)."""
    c = a.shape[0]
    assert c % 4 == 0, "FourierShift requires nc divisible by 4 (torch.chunk into 4)"
    c4 = c // 4
    up = jnp.roll(a[0 * c4:1 * c4], -shift_pixel, axis=2)
    down = jnp.roll(a[1 * c4:2 * c4], shift_pixel, axis=2)
    left = jnp.roll(a[2 * c4:3 * c4], -shift_pixel, axis=3)
    right = jnp.roll(a[3 * c4:4 * c4], shift_pixel, axis=3)
    return jnp.concatenate([up, down, left, right], axis=0)


def fourier_shift_forward(x, params, shift_pixel=1):
    """x: (N, C, H, W) float32 (NCHW, matching PyTorch)."""
    n, c, h, w = x.shape
    # Single layout change: (N,C,H,W) -> (C,N,H,W).  Everything downstream is
    # lane-dense via free reshapes; no further transposes until the very end.
    xt = jnp.transpose(x, (1, 0, 2, 3))                   # (C, N, H, W)

    x_freq = jnp.fft.rfft2(xt, norm="backward")           # (C, N, H, Wf)
    xr = jnp.real(x_freq)
    xi = jnp.imag(x_freq)
    xr = _shift_cnhw(xr, shift_pixel)
    xi = _shift_cnhw(xi, shift_pixel)
    wf = xr.shape[-1]
    m = n * h * wf

    pr, pi = _process_pallas(xr.reshape(c, m), xi.reshape(c, m), params)
    pr = pr.reshape(c, n, h, wf)
    pi = pi.reshape(c, n, h, wf)

    x_out = jnp.fft.irfft2(pr + 1j * pi, s=(h, w), norm="backward")  # (C,N,H,W)
    m2 = n * h * w

    out = _output_pallas(x_out.reshape(c, m2).astype(jnp.float32),
                         xt.reshape(c, m2), params)
    return jnp.transpose(out.reshape(c, n, h, w), (1, 0, 2, 3))


# ----------------------------- params / reference --------------------------

def init_params(nc, key):
    """Deterministic synthetic init of the five 1x1 convs.

    Weights stored (C_out, C_in) so y = W @ x; biases stored (C_out, 1).
    """
    ks = jax.random.split(key, 10)
    s = 1.0 / jnp.sqrt(nc)

    def w(k):
        return jax.random.uniform(k, (nc, nc), jnp.float32, -s, s)

    def b(k):
        return jax.random.uniform(k, (nc, 1), jnp.float32, -s, s)

    return {
        "w1r": w(ks[0]), "b1r": b(ks[1]),
        "w2r": w(ks[2]), "b2r": b(ks[3]),
        "w1i": w(ks[4]), "b1i": b(ks[5]),
        "w2i": w(ks[6]), "b2i": b(ks[7]),
        "wo":  w(ks[8]), "bo":  b(ks[9]),
    }


def reference_forward(x, p, shift_pixel=1):
    """Pure-JAX reference mirroring the PyTorch module exactly (f32 precision)."""
    n, c, h, w = x.shape
    xf = jnp.fft.rfft2(x, norm="backward")
    xr, xi = jnp.real(xf), jnp.imag(xf)

    def shift(a):
        c4 = a.shape[1] // 4
        up = jnp.roll(a[:, 0 * c4:1 * c4], -shift_pixel, axis=2)
        down = jnp.roll(a[:, 1 * c4:2 * c4], shift_pixel, axis=2)
        left = jnp.roll(a[:, 2 * c4:3 * c4], -shift_pixel, axis=3)
        right = jnp.roll(a[:, 3 * c4:4 * c4], shift_pixel, axis=3)
        return jnp.concatenate([up, down, left, right], axis=1)

    xr, xi = shift(xr), shift(xi)

    def conv1x1(a, wm, bm):  # a: NCHW, wm: (C_out, C_in), bm: (C_out, 1)
        y = jnp.einsum("oc,nchw->nohw", wm, a, precision=_HIGHEST)
        return y + bm[:, 0][None, :, None, None]

    def leaky(a):
        return jnp.where(a >= 0, a, 0.1 * a)

    pr = conv1x1(leaky(conv1x1(xr, p["w1r"], p["b1r"])), p["w2r"], p["b2r"])
    pi = conv1x1(leaky(conv1x1(xi, p["w1i"], p["b1i"])), p["w2i"], p["b2i"])
    y = jnp.fft.irfft2(pr + 1j * pi, s=(h, w), norm="backward")
    return conv1x1(y, p["wo"], p["bo"]) + x


# ----------------------------- main -----------------------------------------

if __name__ == "__main__":
    key = jax.random.PRNGKey(0)
    kx, kp = jax.random.split(key)

    N, C, H, W = 2, 8, 16, 16      # nc must be divisible by 4 for the chunk
    x = jax.random.normal(kx, (N, C, H, W), jnp.float32)
    params = init_params(C, kp)

    fwd = jax.jit(fourier_shift_forward, static_argnames=("shift_pixel",))
    out = jax.block_until_ready(fwd(x, params, shift_pixel=1))

    ref = jax.block_until_ready(reference_forward(x, params, shift_pixel=1))
    assert out.shape == (N, C, H, W)
    assert jnp.allclose(out, ref, atol=1e-4, rtol=1e-4), float(
        jnp.max(jnp.abs(out - ref)))

    print("KERNEL_OK")
</pallas_src>

<mosaic_0001>
module attributes {stable_mosaic.version = 11 : i64} {
  func.func @_process_kernel(%arg0: i32, %arg1: memref<8x128xf32, #tpu.memory_space<vmem>>, %arg2: memref<8x128xf32, #tpu.memory_space<vmem>>, %arg3: memref<16x16xf32, #tpu.memory_space<vmem>>, %arg4: memref<16x1xf32, #tpu.memory_space<vmem>>, %arg5: memref<16x16xf32, #tpu.memory_space<vmem>>, %arg6: memref<16x1xf32, #tpu.memory_space<vmem>>, %arg7: memref<8x128xf32, #tpu.memory_space<vmem>>, %arg8: memref<8x128xf32, #tpu.memory_space<vmem>>) attributes {dimension_semantics = [#tpu.dimension_semantics<parallel>], iteration_bounds = array<i64: 3>, scalar_prefetch = 0 : i64, scratch_operands = 0 : i64, tpu.core_type = #tpu.core_type<tc>, window_params = [{transform_indices = @transform_0, window_bounds = array<i64: 8, 128>}, {transform_indices = @transform_1, window_bounds = array<i64: 8, 128>}, {pipeline_mode = #tpu.pipeline_mode<synchronous>, transform_indices = @transform_2, window_bounds = array<i64: 16, 16>}, {pipeline_mode = #tpu.pipeline_mode<synchronous>, transform_indices = @transform_3, window_bounds = array<i64: 16, 1>}, {pipeline_mode = #tpu.pipeline_mode<synchronous>, transform_indices = @transform_4, window_bounds = array<i64: 16, 16>}, {pipeline_mode = #tpu.pipeline_mode<synchronous>, transform_indices = @transform_5, window_bounds = array<i64: 16, 1>}, {transform_indices = @transform_6, window_bounds = array<i64: 8, 128>}, {transform_indices = @transform_7, window_bounds = array<i64: 8, 128>}]} {
    %c0 = arith.constant 0 : index
    %c0_0 = arith.constant 0 : index
    %0 = vector.load %arg1[%c0, %c0_0] : memref<8x128xf32, #tpu.memory_space<vmem>>, vector<8x128xf32>
    %c0_1 = arith.constant 0 : index
    %c0_2 = arith.constant 0 : index
    %1 = vector.load %arg2[%c0_1, %c0_2] : memref<8x128xf32, #tpu.memory_space<vmem>>, vector<8x128xf32>
    %2 = tpu.concatenate %0, %1 in 0 : vector<8x128xf32>, vector<8x128xf32> -> vector<16x128xf32>
    %c0_3 = arith.constant 0 : index
    %c0_4 = arith.constant 0 : index
    %3 = vector.load %arg3[%c0_3, %c0_4] : memref<16x16xf32, #tpu.memory_space<vmem>>, vector<16x16xf32>
    %cst = arith.constant dense<0.000000e+00> : vector<16x128xf32>
    %4 = tpu.matmul %3, %2, %cst {dimension_numbers = #tpu.dot_dimension_numbers<[1], [0], [0], [1], [0, 0, 1, 1], [], []>, precision = #tpu.contract_precision<fp32>} : vector<16x16xf32>, vector<16x128xf32>, vector<16x128xf32> -> vector<16x128xf32>
    %c0_5 = arith.constant 0 : index
    %c0_6 = arith.constant 0 : index
    %5 = vector.load %arg4[%c0_5, %c0_6] : memref<16x1xf32, #tpu.memory_space<vmem>>, vector<16x1xf32>
    %6 = vector.broadcast %5 : vector<16x1xf32> to vector<16x128xf32>
    %7 = arith.addf %4, %6 : vector<16x128xf32>
    %cst_7 = arith.constant 0.000000e+00 : f32
    %8 = vector.broadcast %cst_7 : f32 to vector<16x128xf32>
    %9 = arith.cmpf oge, %7, %8 : vector<16x128xf32>
    %cst_8 = arith.constant 1.000000e-01 : f32
    %10 = vector.broadcast %cst_8 : f32 to vector<16x128xf32>
    %11 = arith.mulf %10, %7 : vector<16x128xf32>
    %12 = arith.select %9, %7, %11 : vector<16x128xi1>, vector<16x128xf32>
    %c0_9 = arith.constant 0 : index
    %c0_10 = arith.constant 0 : index
    %13 = vector.load %arg5[%c0_9, %c0_10] : memref<16x16xf32, #tpu.memory_space<vmem>>, vector<16x16xf32>
    %cst_11 = arith.constant dense<0.000000e+00> : vector<16x128xf32>
    %14 = tpu.matmul %13, %12, %cst_11 {dimension_numbers = #tpu.dot_dimension_numbers<[1], [0], [0], [1], [0, 0, 1, 1], [], []>, precision = #tpu.contract_precision<fp32>} : vector<16x16xf32>, vector<16x128xf32>, vector<16x128xf32> -> vector<16x128xf32>
    %c0_12 = arith.constant 0 : index
    %c0_13 = arith.constant 0 : index
    %15 = vector.load %arg6[%c0_12, %c0_13] : memref<16x1xf32, #tpu.memory_space<vmem>>, vector<16x1xf32>
    %16 = vector.broadcast %15 : vector<16x1xf32> to vector<16x128xf32>
    %17 = arith.addf %14, %16 : vector<16x128xf32>
    %18 = vector.extract_strided_slice %17 {offsets = [0, 0], sizes = [8, 128], strides = [1, 1]} : vector<16x128xf32> to vector<8x128xf32>
    %c0_14 = arith.constant 0 : index
    %c0_15 = arith.constant 0 : index
    %19 = vector.load %arg7[%c0_14, %c0_15] : memref<8x128xf32, #tpu.memory_space<vmem>>, vector<8x128xf32>
    tpu.vector_store %arg7[%c0_14, %c0_15], %18 {strides = array<i32>} : memref<8x128xf32, #tpu.memory_space<vmem>>, vector<8x128xf32>,
    %20 = vector.extract_strided_slice %17 {offsets = [8, 0], sizes = [8, 128], strides = [1, 1]} : vector<16x128xf32> to vector<8x128xf32>
    %c0_16 = arith.constant 0 : index
    %c0_17 = arith.constant 0 : index
    %21 = vector.load %arg8[%c0_16, %c0_17] : memref<8x128xf32, #tpu.memory_space<vmem>>, vector<8x128xf32>
    tpu.vector_store %arg8[%c0_16, %c0_17], %20 {strides = array<i32>} : memref<8x128xf32, #tpu.memory_space<vmem>>, vector<8x128xf32>,
    return
  }
  func.func @transform_0(%arg0: i32) -> (i32, i32) {
    %c0_i32 = arith.constant 0 : i32
    %c0_i32_0 = arith.constant 0 : i32
    return %c0_i32, %arg0 : i32, i32
  }
  func.func @transform_1(%arg0: i32) -> (i32, i32) {
    %c0_i32 = arith.constant 0 : i32
    %c0_i32_0 = arith.constant 0 : i32
    return %c0_i32, %arg0 : i32, i32
  }
  func.func @transform_2(%arg0: i32) -> (i32, i32) {
    %c0_i32 = arith.constant 0 : i32
    %c0_i32_0 = arith.constant 0 : i32
    %c0_i32_1 = arith.constant 0 : i32
    return %c0_i32, %c0_i32_0 : i32, i32
  }
  func.func @transform_3(%arg0: i32) -> (i32, i32) {
    %c0_i32 = arith.constant 0 : i32
    %c0_i32_0 = arith.constant 0 : i32
    %c0_i32_1 = arith.constant 0 : i32
    return %c0_i32, %c0_i32_0 : i32, i32
  }
  func.func @transform_4(%arg0: i32) -> (i32, i32) {
    %c0_i32 = arith.constant 0 : i32
    %c0_i32_0 = arith.constant 0 : i32
    %c0_i32_1 = arith.constant 0 : i32
    return %c0_i32, %c0_i32_0 : i32, i32
  }
  func.func @transform_5(%arg0: i32) -> (i32, i32) {
    %c0_i32 = arith.constant 0 : i32
    %c0_i32_0 = arith.constant 0 : i32
    %c0_i32_1 = arith.constant 0 : i32
    return %c0_i32, %c0_i32_0 : i32, i32
  }
  func.func @transform_6(%arg0: i32) -> (i32, i32) {
    %c0_i32 = arith.constant 0 : i32
    %c0_i32_0 = arith.constant 0 : i32
    return %c0_i32, %arg0 : i32, i32
  }
  func.func @transform_7(%arg0: i32) -> (i32, i32) {
    %c0_i32 = arith.constant 0 : i32
    %c0_i32_0 = arith.constant 0 : i32
    return %c0_i32, %arg0 : i32, i32
  }
}

module attributes {stable_mosaic.version = 11 : i64} {
  func.func @_output_kernel(%arg0: i32, %arg1: memref<8x128xf32, #tpu.memory_space<vmem>>, %arg2: memref<8x128xf32, #tpu.memory_space<vmem>>, %arg3: memref<8x8xf32, #tpu.memory_space<vmem>>, %arg4: memref<8x1xf32, #tpu.memory_space<vmem>>, %arg5: memref<8x128xf32, #tpu.memory_space<vmem>>) attributes {dimension_semantics = [#tpu.dimension_semantics<parallel>], iteration_bounds = array<i64: 4>, scalar_prefetch = 0 : i64, scratch_operands = 0 : i64, tpu.core_type = #tpu.core_type<tc>, window_params = [{transform_indices = @transform_0, window_bounds = array<i64: 8, 128>}, {transform_indices = @transform_1, window_bounds = array<i64: 8, 128>}, {pipeline_mode = #tpu.pipeline_mode<synchronous>, transform_indices = @transform_2, window_bounds = array<i64: 8, 8>}, {pipeline_mode = #tpu.pipeline_mode<synchronous>, transform_indices = @transform_3, window_bounds = array<i64: 8, 1>}, {transform_indices = @transform_4, window_bounds = array<i64: 8, 128>}]} {
    %c0 = arith.constant 0 : index
    %c0_0 = arith.constant 0 : index
    %0 = vector.load %arg3[%c0, %c0_0] : memref<8x8xf32, #tpu.memory_space<vmem>>, vector<8x8xf32>
    %c0_1 = arith.constant 0 : index
    %c0_2 = arith.constant 0 : index
    %1 = vector.load %arg1[%c0_1, %c0_2] : memref<8x128xf32, #tpu.memory_space<vmem>>, vector<8x128xf32>
    %cst = arith.constant dense<0.000000e+00> : vector<8x128xf32>
    %2 = tpu.matmul %0, %1, %cst {dimension_numbers = #tpu.dot_dimension_numbers<[1], [0], [0], [1], [0, 0, 1, 1], [], []>, precision = #tpu.contract_precision<fp32>} : vector<8x8xf32>, vector<8x128xf32>, vector<8x128xf32> -> vector<8x128xf32>
    %c0_3 = arith.constant 0 : index
    %c0_4 = arith.constant 0 : index
    %3 = vector.load %arg4[%c0_3, %c0_4] : memref<8x1xf32, #tpu.memory_space<vmem>>, vector<8x1xf32>
    %4 = vector.broadcast %3 : vector<8x1xf32> to vector<8x128xf32>
    %5 = arith.addf %2, %4 : vector<8x128xf32>
    %c0_5 = arith.constant 0 : index
    %c0_6 = arith.constant 0 : index
    %6 = vector.load %arg2[%c0_5, %c0_6] : memref<8x128xf32, #tpu.memory_space<vmem>>, vector<8x128xf32>
    %7 = arith.addf %5, %6 : vector<8x128xf32>
    %c0_7 = arith.constant 0 : index
    %c0_8 = arith.constant 0 : index
    %8 = vector.load %arg5[%c0_7, %c0_8] : memref<8x128xf32, #tpu.memory_space<vmem>>, vector<8x128xf32>
    tpu.vector_store %arg5[%c0_7, %c0_8], %7 {strides = array<i32>} : memref<8x128xf32, #tpu.memory_space<vmem>>, vector<8x128xf32>,
    return
  }
  func.func @transform_0(%arg0: i32) -> (i32, i32) {
    %c0_i32 = arith.constant 0 : i32
    %c0_i32_0 = arith.constant 0 : i32
    return %c0_i32, %arg0 : i32, i32
  }
  func.func @transform_1(%arg0: i32) -> (i32, i32) {
    %c0_i32 = arith.constant 0 : i32
    %c0_i32_0 = arith.constant 0 : i32
    return %c0_i32, %arg0 : i32, i32
  }
  func.func @transform_2(%arg0: i32) -> (i32, i32) {
    %c0_i32 = arith.constant 0 : i32
    %c0_i32_0 = arith.constant 0 : i32
    %c0_i32_1 = arith.constant 0 : i32
    return %c0_i32, %c0_i32_0 : i32, i32
  }
  func.func @transform_3(%arg0: i32) -> (i32, i32) {
    %c0_i32 = arith.constant 0 : i32
    %c0_i32_0 = arith.constant 0 : i32
    %c0_i32_1 = arith.constant 0 : i32
    return %c0_i32, %c0_i32_0 : i32, i32
  }
  func.func @transform_4(%arg0: i32) -> (i32, i32) {
    %c0_i32 = arith.constant 0 : i32
    %c0_i32_0 = arith.constant 0 : i32
    return %c0_i32, %arg0 : i32, i32
  }
}

</mosaic_0001>

<llo_original>
// kernel: reverse.0
$region0: #{reverse.0}
  %s0 = inlined_call_operand.vmem [shape: f32[8,2,16,7], index: 0, kind: input, shape index: {}]
  %s1 = inlined_call_operand.vmem [shape: f32[8,2,16,7], index: 1, kind: output, shape index: {}]
  $region1: #{reverse.0} parent=0
    #allocation0 [shape = 'u8[131072]{0}', space=vmem, size = 0x20000, scoped, tag = 'operand span for operand 0']
    #allocation1 [shape = 'u8[65536]{0}', space=vmem, size = 0x10000, scoped, tag = 'operand span for operand 1']
    %s2 = scalar_lea.vmem [#allocation0], 8
    // Predicated region
    $region2: #{reverse.0} parent=1 // pred_check
      _
    $region3: #{reverse.0} parent=1 // pred_check_branch
      %4 = sbr.rel (0) target = $region5
    $region4: #{reverse.0} parent=1 // pred_region
      // Predicated region
      $region6: #{reverse.0} parent=4 // pred_check
        _
      $region7: #{reverse.0} parent=4 // pred_check_branch
        %6 = sbr.rel (0) target = $region9
      $region8: #{reverse.0} parent=4 // pred_region
        // Predicated region
        $region21: #{reverse.0} parent=8 // pred_check
          _
        $region22: #{reverse.0} parent=8 // pred_check_branch
          %51 = sbr.rel (0) target = $region24
        $region23: #{reverse.0} parent=8 // pred_region
          loop: start=0, step=1, limit=1
          $region25: #{reverse.0} parent=23 // loop_pre_header
            _
          $region26: #{reverse.0} parent=23 // loop_header
            %s53 = sphi 0, %s57
            %p54 = scmp.ge.s32.totalorder %s53, 1
            %s58 = sphi %s0, %s0
            %s59 = sphi %s2, %s2
          $region27: #{reverse.0} parent=23 // loop_header_branch
            %56 = sbr.rel (%p54) target = $region31
          $region28: #{reverse.0} parent=23 // loop_body
            %v60 = vld [vmem:[%s58] sm:$0xff]
            %61 = vst [vmem:[%s59] sm:$0xff] %v60
            %v62 = vld [vmem:[%s58 + $0x8] sm:$0xff]
            %63 = vst [vmem:[%s59 + $0x10] sm:$0xff] %v62
            %v64 = vld [vmem:[%s58 + $0x10] sm:$0xff]
            %65 = vst [vmem:[%s59 + $0x20] sm:$0xff] %v64
            %v66 = vld [vmem:[%s58 + $0x18] sm:$0xff]
            %67 = vst [vmem:[%s59 + $0x30] sm:$0xff] %v66
            %v68 = vld [vmem:[%s58 + $0x20] sm:$0xff]
            %69 = vst [vmem:[%s59 + $0x40] sm:$0xff] %v68
            %v70 = vld [vmem:[%s58 + $0x28] sm:$0xff]
            %71 = vst [vmem:[%s59 + $0x50] sm:$0xff] %v70
            %v72 = vld [vmem:[%s58 + $0x30] sm:$0xff]
            %73 = vst [vmem:[%s59 + $0x60] sm:$0xff] %v72
            %v74 = vld [vmem:[%s58 + $0x38] sm:$0xff]
            %75 = vst [vmem:[%s59 + $0x70] sm:$0xff] %v74
            %v76 = vld [vmem:[%s58 + $0x40] sm:$0xff]
            %77 = vst [vmem:[%s59 + $0x80] sm:$0xff] %v76
            %v78 = vld [vmem:[%s58 + $0x48] sm:$0xff]
            %79 = vst [vmem:[%s59 + $0x90] sm:$0xff] %v78
            %v80 = vld [vmem:[%s58 + $0x50] sm:$0xff]
            %81 = vst [vmem:[%s59 + $0xa0] sm:$0xff] %v80
            %v82 = vld [vmem:[%s58 + $0x58] sm:$0xff]
            %83 = vst [vmem:[%s59 + $0xb0] sm:$0xff] %v82
            %v84 = vld [vmem:[%s58 + $0x60] sm:$0xff]
            %85 = vst [vmem:[%s59 + $0xc0] sm:$0xff] %v84
            %v86 = vld [vmem:[%s58 + $0x68] sm:$0xff]
            %87 = vst [vmem:[%s59 + $0xd0] sm:$0xff] %v86
            %v88 = vld [vmem:[%s58 + $0x70] sm:$0xff]
            %89 = vst [vmem:[%s59 + $0xe0] sm:$0xff] %v88
            %v90 = vld [vmem:[%s58 + $0x78] sm:$0xff]
            %91 = vst [vmem:[%s59 + $0xf0] sm:$0xff] %v90
          $region29: #{reverse.0} parent=23 // loop_footer
            %s57 = sadd.s32 1, %s53
          $region30: #{reverse.0} parent=23 // loop_footer_branch
            %52 = sbr.rel target = $region26
          $region31: #{reverse.0} parent=23 // loop_exit
            _
        $region24: #{reverse.0} parent=8 // pred_fallthru
          _
        // Predicated region
        $region32: #{reverse.0} parent=8 // pred_check
          _
        $region33: #{reverse.0} parent=8 // pred_check_branch
          %93 = sbr.rel target = $region35
        $region34: #{reverse.0} parent=8 // pred_region
          _
        $region35: #{reverse.0} parent=8 // pred_fallthru
          _
      $region9: #{reverse.0} parent=4 // pred_fallthru
        _
      // Predicated region
      $region10: #{reverse.0} parent=4 // pred_check
        _
      $region11: #{reverse.0} parent=4 // pred_check_branch
        %8 = sbr.rel target = $region13
      $region12: #{reverse.0} parent=4 // pred_region
        loop: start=0, step=1, limit=1
        $region14: #{reverse.0} parent=12 // loop_pre_header
          _
        $region15: #{reverse.0} parent=12 // loop_header
          %s11 = sphi 0, %s15
          %p12 = scmp.ge.s32.totalorder %s11, 1
          %s16 = sphi %s0, %s0
          %s17 = sphi %s2, %s2
        $region16: #{reverse.0} parent=12 // loop_header_branch
          %14 = sbr.rel (%p12) target = $region20
        $region17: #{reverse.0} parent=12 // loop_body
          %v18 = vld [vmem:[%s16] sm:$0xff]
          %19 = vst [vmem:[%s17] sm:$0xff] %v18
          %v20 = vld [vmem:[%s16 + $0x8] sm:$0xff]
          %21 = vst [vmem:[%s17 + $0x10] sm:$0xff] %v20
          %v22 = vld [vmem:[%s16 + $0x10] sm:$0xff]
          %23 = vst [vmem:[%s17 + $0x20] sm:$0xff] %v22
          %v24 = vld [vmem:[%s16 + $0x18] sm:$0xff]
          %25 = vst [vmem:[%s17 + $0x30] sm:$0xff] %v24
          %v26 = vld [vmem:[%s16 + $0x20] sm:$0xff]
          %27 = vst [vmem:[%s17 + $0x40] sm:$0xff] %v26
          %v28 = vld [vmem:[%s16 + $0x28] sm:$0xff]
          %29 = vst [vmem:[%s17 + $0x50] sm:$0xff] %v28
          %v30 = vld [vmem:[%s16 + $0x30] sm:$0xff]
          %31 = vst [vmem:[%s17 + $0x60] sm:$0xff] %v30
          %v32 = vld [vmem:[%s16 + $0x38] sm:$0xff]
          %33 = vst [vmem:[%s17 + $0x70] sm:$0xff] %v32
          %v34 = vld [vmem:[%s16 + $0x40] sm:$0xff]
          %35 = vst [vmem:[%s17 + $0x80] sm:$0xff] %v34
          %v36 = vld [vmem:[%s16 + $0x48] sm:$0xff]
          %37 = vst [vmem:[%s17 + $0x90] sm:$0xff] %v36
          %v38 = vld [vmem:[%s16 + $0x50] sm:$0xff]
          %39 = vst [vmem:[%s17 + $0xa0] sm:$0xff] %v38
          %v40 = vld [vmem:[%s16 + $0x58] sm:$0xff]
          %41 = vst [vmem:[%s17 + $0xb0] sm:$0xff] %v40
          %v42 = vld [vmem:[%s16 + $0x60] sm:$0xff]
          %43 = vst [vmem:[%s17 + $0xc0] sm:$0xff] %v42
          %v44 = vld [vmem:[%s16 + $0x68] sm:$0xff]
          %45 = vst [vmem:[%s17 + $0xd0] sm:$0xff] %v44
          %v46 = vld [vmem:[%s16 + $0x70] sm:$0xff]
          %47 = vst [vmem:[%s17 + $0xe0] sm:$0xff] %v46
          %v48 = vld [vmem:[%s16 + $0x78] sm:$0xff]
          %49 = vst [vmem:[%s17 + $0xf0] sm:$0xff] %v48
        $region18: #{reverse.0} parent=12 // loop_footer
          %s15 = sadd.s32 1, %s11
        $region19: #{reverse.0} parent=12 // loop_footer_branch
          %10 = sbr.rel target = $region15
        $region20: #{reverse.0} parent=12 // loop_exit
          _
      $region13: #{reverse.0} parent=4 // pred_fallthru
        _
    $region5: #{reverse.0} parent=1 // pred_fallthru
      _
    %94 = vnop
    %s95 = scalar_lea.vmem [#allocation0], 7
    %v96 = vld [vmem:[%s95] ss:$-1 sm:$0xff]
    %v97 = vrot.slane %v96, 1
    %98 = vst [vmem:[#allocation1] sm:$0xff] %v97
    %s99 = scalar_lea.vmem [#allocation0], 8
    %s100 = scalar_lea.vmem %s99, 7 [#allocation0]
    %v101 = vld [vmem:[%s100] ss:$-1 sm:$0xff]
    %v102 = vrot.slane %v101, 1
    %v103 = vlaneseq
    %v104 = vshrl.u32 %v103, 7
    %vm105 = vcmp.lt.s32.totalorder %v104, 7
    %106 = vst.msk [vmem:[#allocation1] sm:$0xff] %vm105, %v102
    %s107 = scalar_lea.vmem [#allocation1], 8
    %s108 = scalar_lea.vmem [#allocation0], 16
    %s109 = scalar_lea.vmem %s108, 7 [#allocation0]
    %v110 = vld [vmem:[%s109] ss:$-1 sm:$0xff]
    %v111 = vrot.slane %v110, 1
    %112 = vst [vmem:[%s107] sm:$0xff] %v111
    %s113 = scalar_lea.vmem %s108, 8 [#allocation0]
    %s114 = scalar_lea.vmem %s113, 7 [#allocation0]
    %v115 = vld [vmem:[%s114] ss:$-1 sm:$0xff]
    %v116 = vrot.slane %v115, 1
    %v117 = vlaneseq
    %v118 = vshrl.u32 %v117, 7
    %vm119 = vcmp.lt.s32.totalorder %v118, 7
    %120 = vst.msk [vmem:[%s107] sm:$0xff] %vm119, %v116
    %s121 = scalar_lea.vmem [#allocation1], 16
    %s122 = scalar_lea.vmem [#allocation0], 32
    %s123 = scalar_lea.vmem %s122, 7 [#allocation0]
    %v124 = vld [vmem:[%s123] ss:$-1 sm:$0xff]
    %v125 = vrot.slane %v124, 1
    %126 = vst [vmem:[%s121] sm:$0xff] %v125
    %s127 = scalar_lea.vmem %s122, 8 [#allocation0]
    %s128 = scalar_lea.vmem %s127, 7 [#allocation0]
    %v129 = vld [vmem:[%s128] ss:$-1 sm:$0xff]
    %v130 = vrot.slane %v129, 1
    %v131 = vlaneseq
    %v132 = vshrl.u32 %v131, 7
    %vm133 = vcmp.lt.s32.totalorder %v132, 7
    %134 = vst.msk [vmem:[%s121] sm:$0xff] %vm133, %v130
    %s135 = scalar_lea.vmem [#allocation1], 24
    %s136 = scalar_lea.vmem [#allocation0], 48
    %s137 = scalar_lea.vmem %s136, 7 [#allocation0]
    %v138 = vld [vmem:[%s137] ss:$-1 sm:$0xff]
    %v139 = vrot.slane %v138, 1
    %140 = vst [vmem:[%s135] sm:$0xff] %v139
    %s141 = scalar_lea.vmem %s136, 8 [#allocation0]
    %s142 = scalar_lea.vmem %s141, 7 [#allocation0]
    %v143 = vld [vmem:[%s142] ss:$-1 sm:$0xff]
    %v144 = vrot.slane %v143, 1
    %v145 = vlaneseq
    %v146 = vshrl.u32 %v145, 7
    %vm147 = vcmp.lt.s32.totalorder %v146, 7
    %148 = vst.msk [vmem:[%s135] sm:$0xff] %vm147, %v144
    %s149 = scalar_lea.vmem [#allocation1], 32
    %s150 = scalar_lea.vmem [#allocation0], 64
    %s151 = scalar_lea.vmem %s150, 7 [#allocation0]
    %v152 = vld [vmem:[%s151] ss:$-1 sm:$0xff]
    %v153 = vrot.slane %v152, 1
    %154 = vst [vmem:[%s149] sm:$0xff] %v153
    %s155 = scalar_lea.vmem %s150, 8 [#allocation0]
    %s156 = scalar_lea.vmem %s155, 7 [#allocation0]
    %v157 = vld [vmem:[%s156] ss:$-1 sm:$0xff]
    %v158 = vrot.slane %v157, 1
    %v159 = vlaneseq
    %v160 = vshrl.u32 %v159, 7
    %vm161 = vcmp.lt.s32.totalorder %v160, 7
    %162 = vst.msk [vmem:[%s149] sm:$0xff] %vm161, %v158
    %s163 = scalar_lea.vmem [#allocation1], 40
    %s164 = scalar_lea.vmem [#allocation0], 80
    %s165 = scalar_lea.vmem %s164, 7 [#allocation0]
    %v166 = vld [vmem:[%s165] ss:$-1 sm:$0xff]
    %v167 = vrot.slane %v166, 1
    %168 = vst [vmem:[%s163] sm:$0xff] %v167
    %s169 = scalar_lea.vmem %s164, 8 [#allocation0]
    %s170 = scalar_lea.vmem %s169, 7 [#allocation0]
    %v171 = vld [vmem:[%s170] ss:$-1 sm:$0xff]
    %v172 = vrot.slane %v171, 1
    %v173 = vlaneseq
    %v174 = vshrl.u32 %v173, 7
    %vm175 = vcmp.lt.s32.totalorder %v174, 7
    %176 = vst.msk [vmem:[%s163] sm:$0xff] %vm175, %v172
    %s177 = scalar_lea.vmem [#allocation1], 48
    %s178 = scalar_lea.vmem [#allocation0], 96
    %s179 = scalar_lea.vmem %s178, 7 [#allocation0]
    %v180 = vld [vmem:[%s179] ss:$-1 sm:$0xff]
    %v181 = vrot.slane %v180, 1
    %182 = vst [vmem:[%s177] sm:$0xff] %v181
    %s183 = scalar_lea.vmem %s178, 8 [#allocation0]
    %s184 = scalar_lea.vmem %s183, 7 [#allocation0]
    %v185 = vld [vmem:[%s184] ss:$-1 sm:$0xff]
    %v186 = vrot.slane %v185, 1
    %v187 = vlaneseq
    %v188 = vshrl.u32 %v187, 7
    %vm189 = vcmp.lt.s32.totalorder %v188, 7
    %190 = vst.msk [vmem:[%s177] sm:$0xff] %vm189, %v186
    %s191 = scalar_lea.vmem [#allocation1], 56
    %s192 = scalar_lea.vmem [#allocation0], 112
    %s193 = scalar_lea.vmem %s192, 7 [#allocation0]
    %v194 = vld [vmem:[%s193] ss:$-1 sm:$0xff]
    %v195 = vrot.slane %v194, 1
    %196 = vst [vmem:[%s191] sm:$0xff] %v195
    %s197 = scalar_lea.vmem %s192, 8 [#allocation0]
    %s198 = scalar_lea.vmem %s197, 7 [#allocation0]
    %v199 = vld [vmem:[%s198] ss:$-1 sm:$0xff]
    %v200 = vrot.slane %v199, 1
    %v201 = vlaneseq
    %v202 = vshrl.u32 %v201, 7
    %vm203 = vcmp.lt.s32.totalorder %v202, 7
    %204 = vst.msk [vmem:[%s191] sm:$0xff] %vm203, %v200
    %s205 = scalar_lea.vmem [#allocation1], 64
    %s206 = scalar_lea.vmem [#allocation0], 128
    %s207 = scalar_lea.vmem %s206, 7 [#allocation0]
    %v208 = vld [vmem:[%s207] ss:$-1 sm:$0xff]
    %v209 = vrot.slane %v208, 1
    %210 = vst [vmem:[%s205] sm:$0xff] %v209
    %s211 = scalar_lea.vmem %s206, 8 [#allocation0]
    %s212 = scalar_lea.vmem %s211, 7 [#allocation0]
    %v213 = vld [vmem:[%s212] ss:$-1 sm:$0xff]
    %v214 = vrot.slane %v213, 1
    %v215 = vlaneseq
    %v216 = vshrl.u32 %v215, 7
    %vm217 = vcmp.lt.s32.totalorder %v216, 7
    %218 = vst.msk [vmem:[%s205] sm:$0xff] %vm217, %v214
    %s219 = scalar_lea.vmem [#allocation1], 72
    %s220 = scalar_lea.vmem [#allocation0], 144
    %s221 = scalar_lea.vmem %s220, 7 [#allocation0]
    %v222 = vld [vmem:[%s221] ss:$-1 sm:$0xff]
    %v223 = vrot.slane %v222, 1
    %224 = vst [vmem:[%s219] sm:$0xff] %v223
    %s225 = scalar_lea.vmem %s220, 8 [#allocation0]
    %s226 = scalar_lea.vmem %s225, 7 [#allocation0]
    %v227 = vld [vmem:[%s226] ss:$-1 sm:$0xff]
    %v228 = vrot.slane %v227, 1
    %v229 = vlaneseq
    %v230 = vshrl.u32 %v229, 7
    %vm231 = vcmp.lt.s32.totalorder %v230, 7
    %232 = vst.msk [vmem:[%s219] sm:$0xff] %vm231, %v228
    %s233 = scalar_lea.vmem [#allocation1], 80
    %s234 = scalar_lea.vmem [#allocation0], 160
    %s235 = scalar_lea.vmem %s234, 7 [#allocation0]
    %v236 = vld [vmem:[%s235] ss:$-1 sm:$0xff]
    %v237 = vrot.slane %v236, 1
    %238 = vst [vmem:[%s233] sm:$0xff] %v237
    %s239 = scalar_lea.vmem %s234, 8 [#allocation0]
    %s240 = scalar_lea.vmem %s239, 7 [#allocation0]
    %v241 = vld [vmem:[%s240] ss:$-1 sm:$0xff]
    %v242 = vrot.slane %v241, 1
    %v243 = vlaneseq
    %v244 = vshrl.u32 %v243, 7
    %vm245 = vcmp.lt.s32.totalorder %v244, 7
    %246 = vst.msk [vmem:[%s233] sm:$0xff] %vm245, %v242
    %s247 = scalar_lea.vmem [#allocation1], 88
    %s248 = scalar_lea.vmem [#allocation0], 176
    %s249 = scalar_lea.vmem %s248, 7 [#allocation0]
    %v250 = vld [vmem:[%s249] ss:$-1 sm:$0xff]
    %v251 = vrot.slane %v250, 1
    %252 = vst [vmem:[%s247] sm:$0xff] %v251
    %s253 = scalar_lea.vmem %s248, 8 [#allocation0]
    %s254 = scalar_lea.vmem %s253, 7 [#allocation0]
    %v255 = vld [vmem:[%s254] ss:$-1 sm:$0xff]
    %v256 = vrot.slane %v255, 1
    %v257 = vlaneseq
    %v258 = vshrl.u32 %v257, 7
    %vm259 = vcmp.lt.s32.totalorder %v258, 7
    %260 = vst.msk [vmem:[%s247] sm:$0xff] %vm259, %v256
    %s261 = scalar_lea.vmem [#allocation1], 96
    %s262 = scalar_lea.vmem [#allocation0], 192
    %s263 = scalar_lea.vmem %s262, 7 [#allocation0]
    %v264 = vld [vmem:[%s263] ss:$-1 sm:$0xff]
    %v265 = vrot.slane %v264, 1
    %266 = vst [vmem:[%s261] sm:$0xff] %v265
    %s267 = scalar_lea.vmem %s262, 8 [#allocation0]
    %s268 = scalar_lea.vmem %s267, 7 [#allocation0]
    %v269 = vld [vmem:[%s268] ss:$-1 sm:$0xff]
    %v270 = vrot.slane %v269, 1
    %v271 = vlaneseq
    %v272 = vshrl.u32 %v271, 7
    %vm273 = vcmp.lt.s32.totalorder %v272, 7
    %274 = vst.msk [vmem:[%s261] sm:$0xff] %vm273, %v270
    %s275 = scalar_lea.vmem [#allocation1], 104
    %s276 = scalar_lea.vmem [#allocation0], 208
    %s277 = scalar_lea.vmem %s276, 7 [#allocation0]
    %v278 = vld [vmem:[%s277] ss:$-1 sm:$0xff]
    %v279 = vrot.slane %v278, 1
    %280 = vst [vmem:[%s275] sm:$0xff] %v279
    %s281 = scalar_lea.vmem %s276, 8 [#allocation0]
    %s282 = scalar_lea.vmem %s281, 7 [#allocation0]
    %v283 = vld [vmem:[%s282] ss:$-1 sm:$0xff]
    %v284 = vrot.slane %v283, 1
    %v285 = vlaneseq
    %v286 = vshrl.u32 %v285, 7
    %vm287 = vcmp.lt.s32.totalorder %v286, 7
    %288 = vst.msk [vmem:[%s275] sm:$0xff] %vm287, %v284
    %s289 = scalar_lea.vmem [#allocation1], 112
    %s290 = scalar_lea.vmem [#allocation0], 224
    %s291 = scalar_lea.vmem %s290, 7 [#allocation0]
    %v292 = vld [vmem:[%s291] ss:$-1 sm:$0xff]
    %v293 = vrot.slane %v292, 1
    %294 = vst [vmem:[%s289] sm:$0xff] %v293
    %s295 = scalar_lea.vmem %s290, 8 [#allocation0]
    %s296 = scalar_lea.vmem %s295, 7 [#allocation0]
    %v297 = vld [vmem:[%s296] ss:$-1 sm:$0xff]
    %v298 = vrot.slane %v297, 1
    %v299 = vlaneseq
    %v300 = vshrl.u32 %v299, 7
    %vm301 = vcmp.lt.s32.totalorder %v300, 7
    %302 = vst.msk [vmem:[%s289] sm:$0xff] %vm301, %v298
    %s303 = scalar_lea.vmem [#allocation1], 120
    %s304 = scalar_lea.vmem [#allocation0], 240
    %s305 = scalar_lea.vmem %s304, 7 [#allocation0]
    %v306 = vld [vmem:[%s305] ss:$-1 sm:$0xff]
    %v307 = vrot.slane %v306, 1
    %308 = vst [vmem:[%s303] sm:$0xff] %v307
    %s309 = scalar_lea.vmem %s304, 8 [#allocation0]
    %s310 = scalar_lea.vmem %s309, 7 [#allocation0]
    %v311 = vld [vmem:[%s310] ss:$-1 sm:$0xff]
    %v312 = vrot.slane %v311, 1
    %v313 = vlaneseq
    %v314 = vshrl.u32 %v313, 7
    %vm315 = vcmp.lt.s32.totalorder %v314, 7
    %316 = vst.msk [vmem:[%s303] sm:$0xff] %vm315, %v312
    // Predicated region
    $region36: #{reverse.0} parent=1 // pred_check
      _
    $region37: #{reverse.0} parent=1 // pred_check_branch
      %318 = sbr.rel (0) target = $region39
    $region38: #{reverse.0} parent=1 // pred_region
      // Predicated region
      $region40: #{reverse.0} parent=38 // pred_check
        _
      $region41: #{reverse.0} parent=38 // pred_check_branch
        %320 = sbr.rel (0) target = $region43
      $region42: #{reverse.0} parent=38 // pred_region
        // Predicated region
        $region55: #{reverse.0} parent=42 // pred_check
          _
        $region56: #{reverse.0} parent=42 // pred_check_branch
          %365 = sbr.rel (0) target = $region58
        $region57: #{reverse.0} parent=42 // pred_region
          loop: start=0, step=1, limit=1
          $region59: #{reverse.0} parent=57 // loop_pre_header
            _
          $region60: #{reverse.0} parent=57 // loop_header
            %s367 = sphi 0, %s371
            %p368 = scmp.ge.s32.totalorder %s367, 1
            %s372 = sphi [#allocation1], [#allocation1]
            %s373 = sphi %s1, %s1
          $region61: #{reverse.0} parent=57 // loop_header_branch
            %370 = sbr.rel (%p368) target = $region65
          $region62: #{reverse.0} parent=57 // loop_body
            %v374 = vld [vmem:[%s372] sm:$0xff]
            %375 = vst [vmem:[%s373] sm:$0xff] %v374
            %v376 = vld [vmem:[%s372 + $0x8] sm:$0xff]
            %377 = vst [vmem:[%s373 + $0x8] sm:$0xff] %v376
            %v378 = vld [vmem:[%s372 + $0x10] sm:$0xff]
            %379 = vst [vmem:[%s373 + $0x10] sm:$0xff] %v378
            %v380 = vld [vmem:[%s372 + $0x18] sm:$0xff]
            %381 = vst [vmem:[%s373 + $0x18] sm:$0xff] %v380
            %v382 = vld [vmem:[%s372 + $0x20] sm:$0xff]
            %383 = vst [vmem:[%s373 + $0x20] sm:$0xff] %v382
            %v384 = vld [vmem:[%s372 + $0x28] sm:$0xff]
            %385 = vst [vmem:[%s373 + $0x28] sm:$0xff] %v384
            %v386 = vld [vmem:[%s372 + $0x30] sm:$0xff]
            %387 = vst [vmem:[%s373 + $0x30] sm:$0xff] %v386
            %v388 = vld [vmem:[%s372 + $0x38] sm:$0xff]
            %389 = vst [vmem:[%s373 + $0x38] sm:$0xff] %v388
            %v390 = vld [vmem:[%s372 + $0x40] sm:$0xff]
            %391 = vst [vmem:[%s373 + $0x40] sm:$0xff] %v390
            %v392 = vld [vmem:[%s372 + $0x48] sm:$0xff]
            %393 = vst [vmem:[%s373 + $0x48] sm:$0xff] %v392
            %v394 = vld [vmem:[%s372 + $0x50] sm:$0xff]
            %395 = vst [vmem:[%s373 + $0x50] sm:$0xff] %v394
            %v396 = vld [vmem:[%s372 + $0x58] sm:$0xff]
            %397 = vst [vmem:[%s373 + $0x58] sm:$0xff] %v396
            %v398 = vld [vmem:[%s372 + $0x60] sm:$0xff]
            %399 = vst [vmem:[%s373 + $0x60] sm:$0xff] %v398
            %v400 = vld [vmem:[%s372 + $0x68] sm:$0xff]
            %401 = vst [vmem:[%s373 + $0x68] sm:$0xff] %v400
            %v402 = vld [vmem:[%s372 + $0x70] sm:$0xff]
            %403 = vst [vmem:[%s373 + $0x70] sm:$0xff] %v402
            %v404 = vld [vmem:[%s372 + $0x78] sm:$0xff]
            %405 = vst [vmem:[%s373 + $0x78] sm:$0xff] %v404
          $region63: #{reverse.0} parent=57 // loop_footer
            %s371 = sadd.s32 1, %s367
          $region64: #{reverse.0} parent=57 // loop_footer_branch
            %366 = sbr.rel target = $region60
          $region65: #{reverse.0} parent=57 // loop_exit
            _
        $region58: #{reverse.0} parent=42 // pred_fallthru
          _
        // Predicated region
        $region66: #{reverse.0} parent=42 // pred_check
          _
        $region67: #{reverse.0} parent=42 // pred_check_branch
          %407 = sbr.rel target = $region69
        $region68: #{reverse.0} parent=42 // pred_region
          _
        $region69: #{reverse.0} parent=42 // pred_fallthru
          _
      $region43: #{reverse.0} parent=38 // pred_fallthru
        _
      // Predicated region
      $region44: #{reverse.0} parent=38 // pred_check
        _
      $region45: #{reverse.0} parent=38 // pred_check_branch
        %322 = sbr.rel target = $region47
      $region46: #{reverse.0} parent=38 // pred_region
        loop: start=0, step=1, limit=1
        $region48: #{reverse.0} parent=46 // loop_pre_header
          _
        $region49: #{reverse.0} parent=46 // loop_header
          %s325 = sphi 0, %s329
          %p326 = scmp.ge.s32.totalorder %s325, 1
          %s330 = sphi [#allocation1], [#allocation1]
          %s331 = sphi %s1, %s1
        $region50: #{reverse.0} parent=46 // loop_header_branch
          %328 = sbr.rel (%p326) target = $region54
        $region51: #{reverse.0} parent=46 // loop_body
          %v332 = vld [vmem:[%s330] sm:$0xff]
          %333 = vst [vmem:[%s331] sm:$0xff] %v332
          %v334 = vld [vmem:[%s330 + $0x8] sm:$0xff]
          %335 = vst [vmem:[%s331 + $0x8] sm:$0xff] %v334
          %v336 = vld [vmem:[%s330 + $0x10] sm:$0xff]
          %337 = vst [vmem:[%s331 + $0x10] sm:$0xff] %v336
          %v338 = vld [vmem:[%s330 + $0x18] sm:$0xff]
          %339 = vst [vmem:[%s331 + $0x18] sm:$0xff] %v338
          %v340 = vld [vmem:[%s330 + $0x20] sm:$0xff]
          %341 = vst [vmem:[%s331 + $0x20] sm:$0xff] %v340
          %v342 = vld [vmem:[%s330 + $0x28] sm:$0xff]
          %343 = vst [vmem:[%s331 + $0x28] sm:$0xff] %v342
          %v344 = vld [vmem:[%s330 + $0x30] sm:$0xff]
          %345 = vst [vmem:[%s331 + $0x30] sm:$0xff] %v344
          %v346 = vld [vmem:[%s330 + $0x38] sm:$0xff]
          %347 = vst [vmem:[%s331 + $0x38] sm:$0xff] %v346
          %v348 = vld [vmem:[%s330 + $0x40] sm:$0xff]
          %349 = vst [vmem:[%s331 + $0x40] sm:$0xff] %v348
          %v350 = vld [vmem:[%s330 + $0x48] sm:$0xff]
          %351 = vst [vmem:[%s331 + $0x48] sm:$0xff] %v350
          %v352 = vld [vmem:[%s330 + $0x50] sm:$0xff]
          %353 = vst [vmem:[%s331 + $0x50] sm:$0xff] %v352
          %v354 = vld [vmem:[%s330 + $0x58] sm:$0xff]
          %355 = vst [vmem:[%s331 + $0x58] sm:$0xff] %v354
          %v356 = vld [vmem:[%s330 + $0x60] sm:$0xff]
          %357 = vst [vmem:[%s331 + $0x60] sm:$0xff] %v356
          %v358 = vld [vmem:[%s330 + $0x68] sm:$0xff]
          %359 = vst [vmem:[%s331 + $0x68] sm:$0xff] %v358
          %v360 = vld [vmem:[%s330 + $0x70] sm:$0xff]
          %361 = vst [vmem:[%s331 + $0x70] sm:$0xff] %v360
          %v362 = vld [vmem:[%s330 + $0x78] sm:$0xff]
          %363 = vst [vmem:[%s331 + $0x78] sm:$0xff] %v362
        $region52: #{reverse.0} parent=46 // loop_footer
          %s329 = sadd.s32 1, %s325
        $region53: #{reverse.0} parent=46 // loop_footer_branch
          %324 = sbr.rel target = $region49
        $region54: #{reverse.0} parent=46 // loop_exit
          _
      $region47: #{reverse.0} parent=38 // pred_fallthru
        _
    $region39: #{reverse.0} parent=1 // pred_fallthru
      _
    %408 = vnop

// kernel: fourier_shift_forward.2
$region0: #{fourier_shift_forward.2}
  #allocation0 [shape = 'u32[]', space=smem, size = 0x4, offset = 0x4, fixed_abs, tag = 'smem constant byte address 0x4 - core index']
  #allocation1 [shape = 'u32[144,128]{1,0:T(1,128)}', space=vmem, size = 0x12000, scoped, tag = 'internal scratch']
  %s0 = inlined_call_operand.vmem [shape: f32[8,288], index: 0, kind: input, shape index: {}]
  %s1 = inlined_call_operand.vmem [shape: f32[8,288], index: 1, kind: input, shape index: {}]
  %s2 = inlined_call_operand.vmem [shape: f32[16,16], index: 2, kind: input, shape index: {}]
  %s3 = inlined_call_operand.vmem [shape: f32[16,1], index: 3, kind: input, shape index: {}]
  %s4 = inlined_call_operand.vmem [shape: f32[16,16], index: 4, kind: input, shape index: {}]
  %s5 = inlined_call_operand.vmem [shape: f32[16,1], index: 5, kind: input, shape index: {}]
  %s6 = inlined_call_operand.vmem [shape: f32[8,288], index: 6, kind: output, shape index: {0}]
  %s7 = inlined_call_operand.vmem [shape: f32[8,288], index: 7, kind: output, shape index: {1}]
  %8 = xla_tuple %s6, %s7
  %s9 = sld [smem:[#allocation0]]
  $region65: #{fourier_shift_forward.2} parent=0
    _
  %s11 = ssub.s32 1, %s9
  %s12 = scalar_select 0, %s11, %s9
  loop: start=0, step=1, limit=5
  $region2: #{fourier_shift_forward.2} parent=0 // loop_pre_header
    _
  $region3: #{fourier_shift_forward.2} parent=0 // loop_header
    %s14 = sphi 0, %s18
    %p15 = scmp.ge.s32.totalorder %s14, 5
    %s24 = sphi 0, %s26
    %s27 = sphi 0, %s24
    %s28 = sphi 0, %s27
    %s44 = sphi 0, %s28
    %s50 = sphi 0, %s52
    %s53 = sphi 0, %s50
    %s54 = sphi 0, %s53
    %s70 = sphi 0, %s54
    %s74 = sphi 0, %s74
    %s76 = sphi 0, %s74
    %s77 = sphi 0, %s76
    %s91 = sphi 0, %s77
    %s95 = sphi 0, %s95
    %s97 = sphi 0, %s95
    %s98 = sphi 0, %s97
    %s112 = sphi 0, %s98
    %s116 = sphi 0, %s116
    %s118 = sphi 0, %s116
    %s119 = sphi 0, %s118
    %s133 = sphi 0, %s119
    %s137 = sphi 0, %s137
    %s139 = sphi 0, %s137
    %s140 = sphi 0, %s139
    %s154 = sphi 0, %s140
    %s160 = sphi 0, %s162
    %s163 = sphi 0, %s160
    %s164 = sphi 0, %s163
    %s180 = sphi 0, %s164
    %s186 = sphi 0, %s188
    %s189 = sphi 0, %s186
    %s190 = sphi 0, %s189
    %s206 = sphi 0, %s190
  $region4: #{fourier_shift_forward.2} parent=0 // loop_header_branch
    %17 = sbr.rel (%p15) target = $region8
  $region5: #{fourier_shift_forward.2} parent=0 // loop_body
    %s19 = ssub.s32 %s14, 1
    %s20 = ssub.s32 %s14, 2
    %s21 = sadd.s32 %s14, 1
    %s22 = ssub.s32 %s14, %s21
    %p23 = scmp.eq.s32.totalorder %s22, 0
    %s25 = sadd.s32 %s24, 1
    %s26 = scalar_select %p23, %s24, %s25
    %p29 = pneg %p23
    %p30 = scmp.eq.s32.totalorder %s14, 2
    %p31 = por %p29, %p30
    %p32 = scmp.ne.s32.totalorder %s24, %s27
    %p33 = scmp.eq.s32.totalorder %s14, 0
    %p34 = por %p32, %p33
    %p35 = scmp.ne.s32.totalorder %s24, %s27
    %p36 = scmp.eq.s32.totalorder %s19, 2
    %p37 = por %p35, %p36
    %p38 = scmp.ne.s32.totalorder %s27, %s28
    %p39 = scmp.eq.s32.totalorder %s19, 0
    %p40 = por %p38, %p39
    %p41 = scmp.ne.s32.totalorder %s27, %s28
    %p42 = scmp.eq.s32.totalorder %s20, 2
    %p43 = por %p41, %p42
    %p45 = scmp.ne.s32.totalorder %s28, %s44
    %p46 = scmp.eq.s32.totalorder %s20, 0
    %p47 = por %p45, %p46
    %s48 = ssub.s32 %s14, %s21
    %p49 = scmp.eq.s32.totalorder %s48, 0
    %s51 = sadd.s32 %s50, 1
    %s52 = scalar_select %p49, %s50, %s51
    %p55 = pneg %p49
    %p56 = scmp.eq.s32.totalorder %s14, 2
    %p57 = por %p55, %p56
    %p58 = scmp.ne.s32.totalorder %s50, %s53
    %p59 = scmp.eq.s32.totalorder %s14, 0
    %p60 = por %p58, %p59
    %p61 = scmp.ne.s32.totalorder %s50, %s53
    %p62 = scmp.eq.s32.totalorder %s19, 2
    %p63 = por %p61, %p62
    %p64 = scmp.ne.s32.totalorder %s53, %s54
    %p65 = scmp.eq.s32.totalorder %s19, 0
    %p66 = por %p64, %p65
    %p67 = scmp.ne.s32.totalorder %s53, %s54
    %p68 = scmp.eq.s32.totalorder %s20, 2
    %p69 = por %p67, %p68
    %p71 = scmp.ne.s32.totalorder %s54, %s70
    %p72 = scmp.eq.s32.totalorder %s20, 0
    %p73 = por %p71, %p72
    %s75 = sadd.s32 %s74, 1
    %p78 = scmp.eq.s32.totalorder %s14, 2
    %p79 = scmp.ne.s32.totalorder %s74, %s76
    %p80 = scmp.eq.s32.totalorder %s14, 0
    %p81 = por %p79, %p80
    %p82 = scmp.ne.s32.totalorder %s74, %s76
    %p83 = scmp.eq.s32.totalorder %s19, 2
    %p84 = por %p82, %p83
    %p85 = scmp.ne.s32.totalorder %s76, %s77
    %p86 = scmp.eq.s32.totalorder %s19, 0
    %p87 = por %p85, %p86
    %p88 = scmp.ne.s32.totalorder %s76, %s77
    %p89 = scmp.eq.s32.totalorder %s20, 2
    %p90 = por %p88, %p89
    %p92 = scmp.ne.s32.totalorder %s77, %s91
    %p93 = scmp.eq.s32.totalorder %s20, 0
    %p94 = por %p92, %p93
    %s96 = sadd.s32 %s95, 1
    %p99 = scmp.eq.s32.totalorder %s14, 2
    %p100 = scmp.ne.s32.totalorder %s95, %s97
    %p101 = scmp.eq.s32.totalorder %s14, 0
    %p102 = por %p100, %p101
    %p103 = scmp.ne.s32.totalorder %s95, %s97
    %p104 = scmp.eq.s32.totalorder %s19, 2
    %p105 = por %p103, %p104
    %p106 = scmp.ne.s32.totalorder %s97, %s98
    %p107 = scmp.eq.s32.totalorder %s19, 0
    %p108 = por %p106, %p107
    %p109 = scmp.ne.s32.totalorder %s97, %s98
    %p110 = scmp.eq.s32.totalorder %s20, 2
    %p111 = por %p109, %p110
    %p113 = scmp.ne.s32.totalorder %s98, %s112
    %p114 = scmp.eq.s32.totalorder %s20, 0
    %p115 = por %p113, %p114
    %s117 = sadd.s32 %s116, 1
    %p120 = scmp.eq.s32.totalorder %s14, 2
    %p121 = scmp.ne.s32.totalorder %s116, %s118
    %p122 = scmp.eq.s32.totalorder %s14, 0
    %p123 = por %p121, %p122
    %p124 = scmp.ne.s32.totalorder %s116, %s118
    %p125 = scmp.eq.s32.totalorder %s19, 2
    %p126 = por %p124, %p125
    %p127 = scmp.ne.s32.totalorder %s118, %s119
    %p128 = scmp.eq.s32.totalorder %s19, 0
    %p129 = por %p127, %p128
    %p130 = scmp.ne.s32.totalorder %s118, %s119
    %p131 = scmp.eq.s32.totalorder %s20, 2
    %p132 = por %p130, %p131
    %p134 = scmp.ne.s32.totalorder %s119, %s133
    %p135 = scmp.eq.s32.totalorder %s20, 0
    %p136 = por %p134, %p135
    %s138 = sadd.s32 %s137, 1
    %p141 = scmp.eq.s32.totalorder %s14, 2
    %p142 = scmp.ne.s32.totalorder %s137, %s139
    %p143 = scmp.eq.s32.totalorder %s14, 0
    %p144 = por %p142, %p143
    %p145 = scmp.ne.s32.totalorder %s137, %s139
    %p146 = scmp.eq.s32.totalorder %s19, 2
    %p147 = por %p145, %p146
    %p148 = scmp.ne.s32.totalorder %s139, %s140
    %p149 = scmp.eq.s32.totalorder %s19, 0
    %p150 = por %p148, %p149
    %p151 = scmp.ne.s32.totalorder %s139, %s140
    %p152 = scmp.eq.s32.totalorder %s20, 2
    %p153 = por %p151, %p152
    %p155 = scmp.ne.s32.totalorder %s140, %s154
    %p156 = scmp.eq.s32.totalorder %s20, 0
    %p157 = por %p155, %p156
    %s158 = ssub.s32 %s14, %s21
    %p159 = scmp.eq.s32.totalorder %s158, 0
    %s161 = sadd.s32 %s160, 1
    %s162 = scalar_select %p159, %s160, %s161
    %p165 = pneg %p159
    %p166 = scmp.eq.s32.totalorder %s14, 2
    %p167 = por %p165, %p166
    %p168 = scmp.ne.s32.totalorder %s160, %s163
    %p169 = scmp.eq.s32.totalorder %s14, 0
    %p170 = por %p168, %p169
    %p171 = scmp.ne.s32.totalorder %s160, %s163
    %p172 = scmp.eq.s32.totalorder %s19, 2
    %p173 = por %p171, %p172
    %p174 = scmp.ne.s32.totalorder %s163, %s164
    %p175 = scmp.eq.s32.totalorder %s19, 0
    %p176 = por %p174, %p175
    %p177 = scmp.ne.s32.totalorder %s163, %s164
    %p178 = scmp.eq.s32.totalorder %s20, 2
    %p179 = por %p177, %p178
    %p181 = scmp.ne.s32.totalorder %s164, %s180
    %p182 = scmp.eq.s32.totalorder %s20, 0
    %p183 = por %p181, %p182
    %s184 = ssub.s32 %s14, %s21
    %p185 = scmp.eq.s32.totalorder %s184, 0
    %s187 = sadd.s32 %s186, 1
    %s188 = scalar_select %p185, %s186, %s187
    %p191 = pneg %p185
    %p192 = scmp.eq.s32.totalorder %s14, 2
    %p193 = por %p191, %p192
    %p194 = scmp.ne.s32.totalorder %s186, %s189
    %p195 = scmp.eq.s32.totalorder %s14, 0
    %p196 = por %p194, %p195
    %p197 = scmp.ne.s32.totalorder %s186, %s189
    %p198 = scmp.eq.s32.totalorder %s19, 2
    %p199 = por %p197, %p198
    %p200 = scmp.ne.s32.totalorder %s189, %s190
    %p201 = scmp.eq.s32.totalorder %s19, 0
    %p202 = por %p200, %p201
    %p203 = scmp.ne.s32.totalorder %s189, %s190
    %p204 = scmp.eq.s32.totalorder %s20, 2
    %p205 = por %p203, %p204
    %p207 = scmp.ne.s32.totalorder %s190, %s206
    %p208 = scmp.eq.s32.totalorder %s20, 0
    %p209 = por %p207, %p208
    %p210 = scmp.le.s32.totalorder 1, %s14
    %p211 = scmp.lt.s32.totalorder %s14, 4
    %p212 = pnand %p210, %p211
    %p213 = pneg %p212
    // Predicated region
    $region9: #{fourier_shift_forward.2} parent=5 // pred_check
      _
    $region10: #{fourier_shift_forward.2} parent=5 // pred_check_branch
      %215 = sbr.rel (%p212) target = $region12
    $region11: #{fourier_shift_forward.2} parent=5 // pred_region
      %s216 = ssub.s32 %s14, 1
      // Predicated region
      $region13: #{fourier_shift_forward.2} parent=11 // pred_check
        %p217 = pneg %p87
      $region14: #{fourier_shift_forward.2} parent=11 // pred_check_branch
        %219 = sbr.rel (%p217) target = $region16
      $region15: #{fourier_shift_forward.2} parent=11 // pred_region
        _
      $region16: #{fourier_shift_forward.2} parent=11 // pred_fallthru
        _
      // Predicated region
      $region17: #{fourier_shift_forward.2} parent=11 // pred_check
        %p220 = pneg %p108
      $region18: #{fourier_shift_forward.2} parent=11 // pred_check_branch
        %222 = sbr.rel (%p220) target = $region20
      $region19: #{fourier_shift_forward.2} parent=11 // pred_region
        _
      $region20: #{fourier_shift_forward.2} parent=11 // pred_fallthru
        _
      // Predicated region
      $region21: #{fourier_shift_forward.2} parent=11 // pred_check
        %p223 = pneg %p129
      $region22: #{fourier_shift_forward.2} parent=11 // pred_check_branch
        %225 = sbr.rel (%p223) target = $region24
      $region23: #{fourier_shift_forward.2} parent=11 // pred_region
        _
      $region24: #{fourier_shift_forward.2} parent=11 // pred_fallthru
        _
      // Predicated region
      $region25: #{fourier_shift_forward.2} parent=11 // pred_check
        %p226 = pneg %p150
      $region26: #{fourier_shift_forward.2} parent=11 // pred_check_branch
        %228 = sbr.rel (%p226) target = $region28
      $region27: #{fourier_shift_forward.2} parent=11 // pred_region
        _
      $region28: #{fourier_shift_forward.2} parent=11 // pred_fallthru
        _
    $region12: #{fourier_shift_forward.2} parent=5 // pred_fallthru
      _
    %p229 = scmp.lt.s32.totalorder %s14, 3
    // Predicated region
    $region29: #{fourier_shift_forward.2} parent=5 // pred_check
      %p230 = pneg %p229
    $region30: #{fourier_shift_forward.2} parent=5 // pred_check_branch
      %232 = sbr.rel (%p230) target = $region32
    $region31: #{fourier_shift_forward.2} parent=5 // pred_region
      // Predicated region
      $region33: #{fourier_shift_forward.2} parent=31 // pred_check
        %p233 = pneg %p34
      $region34: #{fourier_shift_forward.2} parent=31 // pred_check_branch
        %235 = sbr.rel (%p233) target = $region36
      $region35: #{fourier_shift_forward.2} parent=31 // pred_region
        %p236 = scmp.lt.s32.totalorder %s14, 2
        %s237 = scalar_select %p236, %s14, 2
        %s238 = smul.addr %s237, 8
        %s239 = scalar_lea.vmem %s0, %s238
      $region36: #{fourier_shift_forward.2} parent=31 // pred_fallthru
        _
      // Predicated region
      $region37: #{fourier_shift_forward.2} parent=31 // pred_check
        %p240 = pneg %p60
      $region38: #{fourier_shift_forward.2} parent=31 // pred_check_branch
        %242 = sbr.rel (%p240) target = $region40
      $region39: #{fourier_shift_forward.2} parent=31 // pred_region
        %p243 = scmp.lt.s32.totalorder %s14, 2
        %s244 = scalar_select %p243, %s14, 2
        %s245 = smul.addr %s244, 8
        %s246 = scalar_lea.vmem %s1, %s245
      $region40: #{fourier_shift_forward.2} parent=31 // pred_fallthru
        _
    $region32: #{fourier_shift_forward.2} parent=5 // pred_fallthru
      _
    %p247 = scmp.le.s32.totalorder 1, %s14
    %p248 = scmp.lt.s32.totalorder %s14, 4
    %p249 = pnand %p247, %p248
    %p250 = pneg %p249
    // Predicated region
    $region41: #{fourier_shift_forward.2} parent=5 // pred_check
      _
    $region42: #{fourier_shift_forward.2} parent=5 // pred_check_branch
      %252 = sbr.rel (%p249) target = $region44
    $region43: #{fourier_shift_forward.2} parent=5 // pred_region
      %s253 = ssub.s32 %s14, 1
      %p254 = scmp.lt.s32.totalorder %s19, 2
      %s255 = scalar_select %p254, %s19, 2
      %s256 = smul.addr %s255, 8
      %s257 = scalar_lea.vmem %s0, %s256
      %p258 = pneg %p40
      %p259 = pneg %p37
      %p260 = scmp.lt.s32.totalorder %s19, 2
      %s261 = scalar_select %p260, %s19, 2
      %s262 = smul.addr %s261, 8
      %s263 = scalar_lea.vmem %s1, %s262
      %p264 = pneg %p66
      %p265 = pneg %p63
      %p266 = pneg %p87
      %p267 = pneg %p84
      %p268 = pneg %p108
      %p269 = pneg %p105
      %p270 = pneg %p129
      %p271 = pneg %p126
      %p272 = pneg %p150
      %p273 = pneg %p147
      %p274 = pneg %p176
      %p275 = pneg %p173
      %p276 = scmp.lt.s32.totalorder %s19, 2
      %s277 = scalar_select %p276, %s19, 2
      %s278 = smul.addr %s277, 8
      %s279 = scalar_lea.vmem %s6, %s278
      %p280 = pneg %p202
      %p281 = pneg %p199
      %p282 = scmp.lt.s32.totalorder %s19, 2
      %s283 = scalar_select %p282, %s19, 2
      %s284 = smul.addr %s283, 8
      %s285 = scalar_lea.vmem %s7, %s284
      %p286 = scmp.lt.s32.totalorder %s19, 2
      %s287 = scalar_select %p286, %s19, 2
      %s288 = smul.addr %s287, 8
      %s289 = scalar_lea.vmem %s0, %s288
      %p290 = scmp.lt.s32.totalorder %s19, 2
      %s291 = scalar_select %p290, %s19, 2
      %s292 = smul.addr %s291, 8
      %s293 = scalar_lea.vmem %s1, %s292
      %p294 = scmp.lt.s32.totalorder %s19, 2
      %s295 = scalar_select %p294, %s19, 2
      %s296 = smul.addr %s295, 8
      %s297 = scalar_lea.vmem %s6, %s296
      %p298 = scmp.lt.s32.totalorder %s19, 2
      %s299 = scalar_select %p298, %s19, 2
      %s300 = smul.addr %s299, 8
      %s301 = scalar_lea.vmem %s7, %s300
      %v302 = vld [vmem:[%s289] sm:$0xff]
      %v303 = vld [vmem:[%s293] sm:$0xff]
      %v304 = vld [vmem:[%s2] sm:$0xff]
      %v305 = vld [vmem:[%s2 + $0x8] sm:$0xff]
      %v306 = vld [vmem:[%s3] sm:$0xff]
      %v307 = vld [vmem:[%s3 + $0x8] sm:$0xff]
      %309 = vset.pattern.permute.xlu0 0
      %310 = vperm.xlu0 %309, %v306
      %v311 = vpop.permute.xlu0 %310
      %314 = vset.pattern.permute.xlu0 0
      %315 = vperm.xlu0 %314, %v307
      %v316 = vpop.permute.xlu0 %315
      %vm318 = vcmask 130048
      %v320 = vsel %vm318, %v304, 0
      %v323 = vsel %vm318, %v305, 0
      %325 = vmatprep.subr.mxu0 0.0
      %v326 = vand.u32 %v302, 4294901760
      %327 = vmatpush1.msra.mxu0 %v326
      %328 = vmatprep.subr.mxu0 0.0
      %v329 = vand.u32 %v303, 4294901760
      %330 = vmatpush1.msra.mxu0 %v329
      %331 = vmatprep.subr.mxu0 0.0
      %332 = vmatpush1.msra.mxu0 0.0
      %333 = vmatprep.subr.mxu0 0.0
      %334 = vmatpush1.msra.mxu0 0.0
      %335 = vmatprep.subr.mxu0 0.0
      %336 = vmatpush1.msra.mxu0 0.0
      %337 = vmatprep.subr.mxu0 0.0
      %338 = vmatpush1.msra.mxu0 0.0
      %339 = vmatprep.subr.mxu0 0.0
      %340 = vmatpush1.msra.mxu0 0.0
      %341 = vmatprep.subr.mxu0 0.0
      %342 = vmatpush1.msra.mxu0 0.0
      %343 = vmatprep.subr.mxu0 0.0
      %344 = vmatpush1.msra.mxu0 0.0
      %345 = vmatprep.subr.mxu0 0.0
      %346 = vmatpush1.msra.mxu0 0.0
      %347 = vmatprep.subr.mxu0 0.0
      %348 = vmatpush1.msra.mxu0 0.0
      %349 = vmatprep.subr.mxu0 0.0
      %350 = vmatpush1.msra.mxu0 0.0
      %351 = vmatprep.subr.mxu0 0.0
      %352 = vmatpush1.msra.mxu0 0.0
      %353 = vmatprep.subr.mxu0 0.0
      %354 = vmatpush1.msra.mxu0 0.0
      %355 = vmatprep.subr.mxu0 0.0
      %356 = vmatpush1.msra.mxu0 0.0
      %357 = vmatprep.subr.mxu0 0.0
      %358 = vmatpush1.msra.mxu0 0.0
      %359 = vmatprep.subr.mxu0 0.0
      %360 = vmatpush1.msra.mxu0 0.0
      %361 = vmatprep.subr.mxu0 0.0
      %362 = vmatpush1.msra.mxu0 0.0
      %363 = vmatprep.subr.mxu0 0.0
      %364 = vmatpush1.msra.mxu0 0.0
      %365 = vmatprep.subr.mxu0 0.0
      %366 = vmatpush1.msra.mxu0 0.0
      %367 = vmatprep.subr.mxu0 0.0
      %368 = vmatpush1.msra.mxu0 0.0
      %369 = vmatprep.subr.mxu0 0.0
      %370 = vmatpush1.msra.mxu0 0.0
      %371 = vmatprep.subr.mxu0 0.0
      %372 = vmatpush1.msra.mxu0 0.0
      %373 = vmatprep.subr.mxu0 0.0
      %374 = vmatpush1.msra.mxu0 0.0
      %375 = vmatprep.subr.mxu0 0.0
      %376 = vmatpush1.msra.mxu0 0.0
      %377 = vmatprep.subr.mxu0 0.0
      %378 = vmatpush1.msra.mxu0 0.0
      %379 = vmatprep.subr.mxu0 0.0
      %380 = vmatpush1.msra.mxu0 0.0
      %381 = vmatprep.subr.mxu0 0.0
      %382 = vmatpush1.msra.mxu0 0.0
      %383 = vmatprep.subr.mxu0 0.0
      %384 = vmatpush1.msra.mxu0 0.0
      %385 = vmatprep.subr.mxu0 0.0
      %386 = vmatpush1.msra.mxu0 0.0
      %387 = vmatprep.subr.mxu0 0.0
      %388 = vmatpush1.msra.mxu0 0.0
      %389 = vmatprep.subr.mxu0 0.0
      %390 = vmatpush1.msra.mxu0 0.0
      %391 = vmatprep.mubr.f32.mxu0 0.0
      %v392 = vand.u32 %v320, 4294901760
      %v393 = vsub.f32 %v320, %v392
      %v394 = vand.u32 %v393, 4294901760
      %v395 = vsub.f32 %v393, %v394
      %v396 = vand.u32 %v395, 4294901760
      %397 = vmatmul.mubr.f32.gmra.mrb[0].mxu0 %v396
      %v398 = vpop.f32.mrb[0].mxu0
      %v399 = vadd.f32 %v311, %v398
      %v400 = vpop.f32.mrb[0].mxu0
      %401 = vmatprep.mubr.f32.mxu0 0.0
      %v402 = vand.u32 %v323, 4294901760
      %v403 = vsub.f32 %v323, %v402
      %v404 = vand.u32 %v403, 4294901760
      %v405 = vsub.f32 %v403, %v404
      %v406 = vand.u32 %v405, 4294901760
      %407 = vmatmul.mubr.f32.gmra.mrb[0].mxu0 %v406
      %v408 = vpop.f32.mrb[0].mxu0
      %v409 = vadd.f32 %v316, %v408
      %v410 = vpop.f32.mrb[0].mxu0
      %411 = vdwg.mxu0
      %412 = vmatprep.subr.mxu0 0.0
      %v413 = vand.u32 %v302, 4294901760
      %v414 = vsub.f32 %v302, %v413
      %v415 = vand.u32 %v414, 4294901760
      %v416 = vsub.f32 %v414, %v415
      %v417 = vand.u32 %v416, 4294901760
      %418 = vmatpush1.msra.mxu0 %v417
      %419 = vmatprep.subr.mxu0 0.0
      %v420 = vand.u32 %v303, 4294901760
      %v421 = vsub.f32 %v303, %v420
      %v422 = vand.u32 %v421, 4294901760
      %v423 = vsub.f32 %v421, %v422
      %v424 = vand.u32 %v423, 4294901760
      %425 = vmatpush1.msra.mxu0 %v424
      %426 = vmatprep.subr.mxu0 0.0
      %427 = vmatpush1.msra.mxu0 0.0
      %428 = vmatprep.subr.mxu0 0.0
      %429 = vmatpush1.msra.mxu0 0.0
      %430 = vmatprep.subr.mxu0 0.0
      %431 = vmatpush1.msra.mxu0 0.0
      %432 = vmatprep.subr.mxu0 0.0
      %433 = vmatpush1.msra.mxu0 0.0
      %434 = vmatprep.subr.mxu0 0.0
      %435 = vmatpush1.msra.mxu0 0.0
      %436 = vmatprep.subr.mxu0 0.0
      %437 = vmatpush1.msra.mxu0 0.0
      %438 = vmatprep.subr.mxu0 0.0
      %439 = vmatpush1.msra.mxu0 0.0
      %440 = vmatprep.subr.mxu0 0.0
      %441 = vmatpush1.msra.mxu0 0.0
      %442 = vmatprep.subr.mxu0 0.0
      %443 = vmatpush1.msra.mxu0 0.0
      %444 = vmatprep.subr.mxu0 0.0
      %445 = vmatpush1.msra.mxu0 0.0
      %446 = vmatprep.subr.mxu0 0.0
      %447 = vmatpush1.msra.mxu0 0.0
      %448 = vmatprep.subr.mxu0 0.0
      %449 = vmatpush1.msra.mxu0 0.0
      %450 = vmatprep.subr.mxu0 0.0
      %451 = vmatpush1.msra.mxu0 0.0
      %452 = vmatprep.subr.mxu0 0.0
      %453 = vmatpush1.msra.mxu0 0.0
      %454 = vmatprep.subr.mxu0 0.0
      %455 = vmatpush1.msra.mxu0 0.0
      %456 = vmatprep.subr.mxu0 0.0
      %457 = vmatpush1.msra.mxu0 0.0
      %458 = vmatprep.subr.mxu0 0.0
      %459 = vmatpush1.msra.mxu0 0.0
      %460 = vmatprep.subr.mxu0 0.0
      %461 = vmatpush1.msra.mxu0 0.0
      %462 = vmatprep.subr.mxu0 0.0
      %463 = vmatpush1.msra.mxu0 0.0
      %464 = vmatprep.subr.mxu0 0.0
      %465 = vmatpush1.msra.mxu0 0.0
      %466 = vmatprep.subr.mxu0 0.0
      %467 = vmatpush1.msra.mxu0 0.0
      %468 = vmatprep.subr.mxu0 0.0
      %469 = vmatpush1.msra.mxu0 0.0
      %470 = vmatprep.subr.mxu0 0.0
      %471 = vmatpush1.msra.mxu0 0.0
      %472 = vmatprep.subr.mxu0 0.0
      %473 = vmatpush1.msra.mxu0 0.0
      %474 = vmatprep.subr.mxu0 0.0
      %475 = vmatpush1.msra.mxu0 0.0
      %476 = vmatprep.subr.mxu0 0.0
      %477 = vmatpush1.msra.mxu0 0.0
      %478 = vmatprep.subr.mxu0 0.0
      %479 = vmatpush1.msra.mxu0 0.0
      %480 = vmatprep.subr.mxu0 0.0
      %481 = vmatpush1.msra.mxu0 0.0
      %482 = vmatprep.subr.mxu0 0.0
      %483 = vmatpush1.msra.mxu0 0.0
      %484 = vmatprep.subr.mxu0 0.0
      %485 = vmatpush1.msra.mxu0 0.0
      %486 = vmatprep.mubr.f32.mxu0 0.0
      %v487 = vand.u32 %v320, 4294901760
      %488 = vmatmul.mubr.f32.gmra.mrb[0].mxu0 %v487
      %v489 = vpop.f32.mrb[0].mxu0
      %v490 = vadd.f32 %v399, %v489
      %v491 = vpop.f32.mrb[0].mxu0
      %492 = vmatprep.mubr.f32.mxu0 0.0
      %v493 = vand.u32 %v323, 4294901760
      %494 = vmatmul.mubr.f32.gmra.mrb[0].mxu0 %v493
      %v495 = vpop.f32.mrb[0].mxu0
      %v496 = vadd.f32 %v409, %v495
      %v497 = vpop.f32.mrb[0].mxu0
      %498 = vdwg.mxu0
      %499 = vmatprep.subr.mxu0 0.0
      %v500 = vand.u32 %v302, 4294901760
      %v501 = vsub.f32 %v302, %v500
      %502 = vmatpush1.msra.mxu0 %v501
      %503 = vmatprep.subr.mxu0 0.0
      %v504 = vand.u32 %v303, 4294901760
      %v505 = vsub.f32 %v303, %v504
      %506 = vmatpush1.msra.mxu0 %v505
      %507 = vmatprep.subr.mxu0 0.0
      %508 = vmatpush1.msra.mxu0 0.0
      %509 = vmatprep.subr.mxu0 0.0
      %510 = vmatpush1.msra.mxu0 0.0
      %511 = vmatprep.subr.mxu0 0.0
      %512 = vmatpush1.msra.mxu0 0.0
      %513 = vmatprep.subr.mxu0 0.0
      %514 = vmatpush1.msra.mxu0 0.0
      %515 = vmatprep.subr.mxu0 0.0
      %516 = vmatpush1.msra.mxu0 0.0
      %517 = vmatprep.subr.mxu0 0.0
      %518 = vmatpush1.msra.mxu0 0.0
      %519 = vmatprep.subr.mxu0 0.0
      %520 = vmatpush1.msra.mxu0 0.0
      %521 = vmatprep.subr.mxu0 0.0
      %522 = vmatpush1.msra.mxu0 0.0
      %523 = vmatprep.subr.mxu0 0.0
      %524 = vmatpush1.msra.mxu0 0.0
      %525 = vmatprep.subr.mxu0 0.0
      %526 = vmatpush1.msra.mxu0 0.0
      %527 = vmatprep.subr.mxu0 0.0
      %528 = vmatpush1.msra.mxu0 0.0
      %529 = vmatprep.subr.mxu0 0.0
      %530 = vmatpush1.msra.mxu0 0.0
      %531 = vmatprep.subr.mxu0 0.0
      %532 = vmatpush1.msra.mxu0 0.0
      %533 = vmatprep.subr.mxu0 0.0
      %534 = vmatpush1.msra.mxu0 0.0
      %535 = vmatprep.subr.mxu0 0.0
      %536 = vmatpush1.msra.mxu0 0.0
      %537 = vmatprep.subr.mxu0 0.0
      %538 = vmatpush1.msra.mxu0 0.0
      %539 = vmatprep.subr.mxu0 0.0
      %540 = vmatpush1.msra.mxu0 0.0
      %541 = vmatprep.subr.mxu0 0.0
      %542 = vmatpush1.msra.mxu0 0.0
      %543 = vmatprep.subr.mxu0 0.0
      %544 = vmatpush1.msra.mxu0 0.0
      %545 = vmatprep.subr.mxu0 0.0
      %546 = vmatpush1.msra.mxu0 0.0
      %547 = vmatprep.subr.mxu0 0.0
      %548 = vmatpush1.msra.mxu0 0.0
      %549 = vmatprep.subr.mxu0 0.0
      %550 = vmatpush1.msra.mxu0 0.0
      %551 = vmatprep.subr.mxu0 0.0
      %552 = vmatpush1.msra.mxu0 0.0
      %553 = vmatprep.subr.mxu0 0.0
      %554 = vmatpush1.msra.mxu0 0.0
      %555 = vmatprep.subr.mxu0 0.0
      %556 = vmatpush1.msra.mxu0 0.0
      %557 = vmatprep.subr.mxu0 0.0
      %558 = vmatpush1.msra.mxu0 0.0
      %559 = vmatprep.subr.mxu0 0.0
      %560 = vmatpush1.msra.mxu0 0.0
      %561 = vmatprep.subr.mxu0 0.0
      %562 = vmatpush1.msra.mxu0 0.0
      %563 = vmatprep.subr.mxu0 0.0
      %564 = vmatpush1.msra.mxu0 0.0
      %565 = vmatprep.subr.mxu0 0.0
      %566 = vmatpush1.msra.mxu0 0.0
      %567 = vmatprep.mubr.f32.mxu0 0.0
      %v568 = vand.u32 %v320, 4294901760
      %v569 = vsub.f32 %v320, %v568
      %570 = vmatmul.mubr.f32.gmra.mrb[0].mxu0 %v569
      %v571 = vpop.f32.mrb[0].mxu0
      %v572 = vadd.f32 %v490, %v571
      %v573 = vpop.f32.mrb[0].mxu0
      %574 = vmatprep.mubr.f32.mxu0 0.0
      %v575 = vand.u32 %v323, 4294901760
      %v576 = vsub.f32 %v323, %v575
      %577 = vmatmul.mubr.f32.gmra.mrb[0].mxu0 %v576
      %v578 = vpop.f32.mrb[0].mxu0
      %v579 = vadd.f32 %v496, %v578
      %v580 = vpop.f32.mrb[0].mxu0
      %581 = vdwg.mxu0
      %582 = vmatprep.subr.mxu0 0.0
      %v583 = vand.u32 %v302, 4294901760
      %584 = vmatpush1.msra.mxu0 %v583
      %585 = vmatprep.subr.mxu0 0.0
      %v586 = vand.u32 %v303, 4294901760
      %587 = vmatpush1.msra.mxu0 %v586
      %588 = vmatprep.subr.mxu0 0.0
      %589 = vmatpush1.msra.mxu0 0.0
      %590 = vmatprep.subr.mxu0 0.0
      %591 = vmatpush1.msra.mxu0 0.0
      %592 = vmatprep.subr.mxu0 0.0
      %593 = vmatpush1.msra.mxu0 0.0
      %594 = vmatprep.subr.mxu0 0.0
      %595 = vmatpush1.msra.mxu0 0.0
      %596 = vmatprep.subr.mxu0 0.0
      %597 = vmatpush1.msra.mxu0 0.0
      %598 = vmatprep.subr.mxu0 0.0
      %599 = vmatpush1.msra.mxu0 0.0
      %600 = vmatprep.subr.mxu0 0.0
      %601 = vmatpush1.msra.mxu0 0.0
      %602 = vmatprep.subr.mxu0 0.0
      %603 = vmatpush1.msra.mxu0 0.0
      %604 = vmatprep.subr.mxu0 0.0
      %605 = vmatpush1.msra.mxu0 0.0
      %606 = vmatprep.subr.mxu0 0.0
      %607 = vmatpush1.msra.mxu0 0.0
      %608 = vmatprep.subr.mxu0 0.0
      %609 = vmatpush1.msra.mxu0 0.0
      %610 = vmatprep.subr.mxu0 0.0
      %611 = vmatpush1.msra.mxu0 0.0
      %612 = vmatprep.subr.mxu0 0.0
      %613 = vmatpush1.msra.mxu0 0.0
      %614 = vmatprep.subr.mxu0 0.0
      %615 = vmatpush1.msra.mxu0 0.0
      %616 = vmatprep.subr.mxu0 0.0
      %617 = vmatpush1.msra.mxu0 0.0
      %618 = vmatprep.subr.mxu0 0.0
      %619 = vmatpush1.msra.mxu0 0.0
      %620 = vmatprep.subr.mxu0 0.0
      %621 = vmatpush1.msra.mxu0 0.0
      %622 = vmatprep.subr.mxu0 0.0
      %623 = vmatpush1.msra.mxu0 0.0
      %624 = vmatprep.subr.mxu0 0.0
      %625 = vmatpush1.msra.mxu0 0.0
      %626 = vmatprep.subr.mxu0 0.0
      %627 = vmatpush1.msra.mxu0 0.0
      %628 = vmatprep.subr.mxu0 0.0
      %629 = vmatpush1.msra.mxu0 0.0
      %630 = vmatprep.subr.mxu0 0.0
      %631 = vmatpush1.msra.mxu0 0.0
      %632 = vmatprep.subr.mxu0 0.0
      %633 = vmatpush1.msra.mxu0 0.0
      %634 = vmatprep.subr.mxu0 0.0
      %635 = vmatpush1.msra.mxu0 0.0
      %636 = vmatprep.subr.mxu0 0.0
      %637 = vmatpush1.msra.mxu0 0.0
      %638 = vmatprep.subr.mxu0 0.0
      %639 = vmatpush1.msra.mxu0 0.0
      %640 = vmatprep.subr.mxu0 0.0
      %641 = vmatpush1.msra.mxu0 0.0
      %642 = vmatprep.subr.mxu0 0.0
      %643 = vmatpush1.msra.mxu0 0.0
      %644 = vmatprep.subr.mxu0 0.0
      %645 = vmatpush1.msra.mxu0 0.0
      %646 = vmatprep.subr.mxu0 0.0
      %647 = vmatpush1.msra.mxu0 0.0
      %648 = vmatprep.mubr.f32.mxu0 0.0
      %v649 = vand.u32 %v320, 4294901760
      %v650 = vsub.f32 %v320, %v649
      %v651 = vand.u32 %v650, 4294901760
      %652 = vmatmul.mubr.f32.gmra.mrb[0].mxu0 %v651
      %v653 = vpop.f32.mrb[0].mxu0
      %v654 = vadd.f32 %v572, %v653
      %v655 = vpop.f32.mrb[0].mxu0
      %656 = vmatprep.mubr.f32.mxu0 0.0
      %v657 = vand.u32 %v323, 4294901760
      %v658 = vsub.f32 %v323, %v657
      %v659 = vand.u32 %v658, 4294901760
      %660 = vmatmul.mubr.f32.gmra.mrb[0].mxu0 %v659
      %v661 = vpop.f32.mrb[0].mxu0
      %v662 = vadd.f32 %v579, %v661
      %v663 = vpop.f32.mrb[0].mxu0
      %664 = vdwg.mxu0
      %665 = vmatprep.subr.mxu0 0.0
      %v666 = vand.u32 %v302, 4294901760
      %v667 = vsub.f32 %v302, %v666
      %v668 = vand.u32 %v667, 4294901760
      %669 = vmatpush1.msra.mxu0 %v668
      %670 = vmatprep.subr.mxu0 0.0
      %v671 = vand.u32 %v303, 4294901760
      %v672 = vsub.f32 %v303, %v671
      %v673 = vand.u32 %v672, 4294901760
      %674 = vmatpush1.msra.mxu0 %v673
      %675 = vmatprep.subr.mxu0 0.0
      %676 = vmatpush1.msra.mxu0 0.0
      %677 = vmatprep.subr.mxu0 0.0
      %678 = vmatpush1.msra.mxu0 0.0
      %679 = vmatprep.subr.mxu0 0.0
      %680 = vmatpush1.msra.mxu0 0.0
      %681 = vmatprep.subr.mxu0 0.0
      %682 = vmatpush1.msra.mxu0 0.0
      %683 = vmatprep.subr.mxu0 0.0
      %684 = vmatpush1.msra.mxu0 0.0
      %685 = vmatprep.subr.mxu0 0.0
      %686 = vmatpush1.msra.mxu0 0.0
      %687 = vmatprep.subr.mxu0 0.0
      %688 = vmatpush1.msra.mxu0 0.0
      %689 = vmatprep.subr.mxu0 0.0
      %690 = vmatpush1.msra.mxu0 0.0
      %691 = vmatprep.subr.mxu0 0.0
      %692 = vmatpush1.msra.mxu0 0.0
      %693 = vmatprep.subr.mxu0 0.0
      %694 = vmatpush1.msra.mxu0 0.0
      %695 = vmatprep.subr.mxu0 0.0
      %696 = vmatpush1.msra.mxu0 0.0
      %697 = vmatprep.subr.mxu0 0.0
      %698 = vmatpush1.msra.mxu0 0.0
      %699 = vmatprep.subr.mxu0 0.0
      %700 = vmatpush1.msra.mxu0 0.0
      %701 = vmatprep.subr.mxu0 0.0
      %702 = vmatpush1.msra.mxu0 0.0
      %703 = vmatprep.subr.mxu0 0.0
      %704 = vmatpush1.msra.mxu0 0.0
      %705 = vmatprep.subr.mxu0 0.0
      %706 = vmatpush1.msra.mxu0 0.0
      %707 = vmatprep.subr.mxu0 0.0
      %708 = vmatpush1.msra.mxu0 0.0
      %709 = vmatprep.subr.mxu0 0.0
      %710 = vmatpush1.msra.mxu0 0.0
      %711 = vmatprep.subr.mxu0 0.0
      %712 = vmatpush1.msra.mxu0 0.0
      %713 = vmatprep.subr.mxu0 0.0
      %714 = vmatpush1.msra.mxu0 0.0
      %715 = vmatprep.subr.mxu0 0.0
      %716 = vmatpush1.msra.mxu0 0.0
      %717 = vmatprep.subr.mxu0 0.0
      %718 = vmatpush1.msra.mxu0 0.0
      %719 = vmatprep.subr.mxu0 0.0
      %720 = vmatpush1.msra.mxu0 0.0
      %721 = vmatprep.subr.mxu0 0.0
      %722 = vmatpush1.msra.mxu0 0.0
      %723 = vmatprep.subr.mxu0 0.0
      %724 = vmatpush1.msra.mxu0 0.0
      %725 = vmatprep.subr.mxu0 0.0
      %726 = vmatpush1.msra.mxu0 0.0
      %727 = vmatprep.subr.mxu0 0.0
      %728 = vmatpush1.msra.mxu0 0.0
      %729 = vmatprep.subr.mxu0 0.0
      %730 = vmatpush1.msra.mxu0 0.0
      %731 = vmatprep.subr.mxu0 0.0
      %732 = vmatpush1.msra.mxu0 0.0
      %733 = vmatprep.subr.mxu0 0.0
      %734 = vmatpush1.msra.mxu0 0.0
      %735 = vmatprep.mubr.f32.mxu0 0.0
      %v736 = vand.u32 %v320, 4294901760
      %737 = vmatmul.mubr.f32.gmra.mrb[0].mxu0 %v736
      %v738 = vpop.f32.mrb[0].mxu0
      %v739 = vadd.f32 %v654, %v738
      %v740 = vpop.f32.mrb[0].mxu0
      %741 = vmatprep.mubr.f32.mxu0 0.0
      %v742 = vand.u32 %v323, 4294901760
      %743 = vmatmul.mubr.f32.gmra.mrb[0].mxu0 %v742
      %v744 = vpop.f32.mrb[0].mxu0
      %v745 = vadd.f32 %v662, %v744
      %v746 = vpop.f32.mrb[0].mxu0
      %747 = vdwg.mxu0
      %748 = vmatprep.subr.mxu0 0.0
      %v749 = vand.u32 %v302, 4294901760
      %750 = vmatpush1.msra.mxu0 %v749
      %751 = vmatprep.subr.mxu0 0.0
      %v752 = vand.u32 %v303, 4294901760
      %753 = vmatpush1.msra.mxu0 %v752
      %754 = vmatprep.subr.mxu0 0.0
      %755 = vmatpush1.msra.mxu0 0.0
      %756 = vmatprep.subr.mxu0 0.0
      %757 = vmatpush1.msra.mxu0 0.0
      %758 = vmatprep.subr.mxu0 0.0
      %759 = vmatpush1.msra.mxu0 0.0
      %760 = vmatprep.subr.mxu0 0.0
      %761 = vmatpush1.msra.mxu0 0.0
      %762 = vmatprep.subr.mxu0 0.0
      %763 = vmatpush1.msra.mxu0 0.0
      %764 = vmatprep.subr.mxu0 0.0
      %765 = vmatpush1.msra.mxu0 0.0
      %766 = vmatprep.subr.mxu0 0.0
      %767 = vmatpush1.msra.mxu0 0.0
      %768 = vmatprep.subr.mxu0 0.0
      %769 = vmatpush1.msra.mxu0 0.0
      %770 = vmatprep.subr.mxu0 0.0
      %771 = vmatpush1.msra.mxu0 0.0
      %772 = vmatprep.subr.mxu0 0.0
      %773 = vmatpush1.msra.mxu0 0.0
      %774 = vmatprep.subr.mxu0 0.0
      %775 = vmatpush1.msra.mxu0 0.0
      %776 = vmatprep.subr.mxu0 0.0
      %777 = vmatpush1.msra.mxu0 0.0
      %778 = vmatprep.subr.mxu0 0.0
      %779 = vmatpush1.msra.mxu0 0.0
      %780 = vmatprep.subr.mxu0 0.0
      %781 = vmatpush1.msra.mxu0 0.0
      %782 = vmatprep.subr.mxu0 0.0
      %783 = vmatpush1.msra.mxu0 0.0
      %784 = vmatprep.subr.mxu0 0.0
      %785 = vmatpush1.msra.mxu0 0.0
      %786 = vmatprep.subr.mxu0 0.0
      %787 = vmatpush1.msra.mxu0 0.0
      %788 = vmatprep.subr.mxu0 0.0
      %789 = vmatpush1.msra.mxu0 0.0
      %790 = vmatprep.subr.mxu0 0.0
      %791 = vmatpush1.msra.mxu0 0.0
      %792 = vmatprep.subr.mxu0 0.0
      %793 = vmatpush1.msra.mxu0 0.0
      %794 = vmatprep.subr.mxu0 0.0
      %795 = vmatpush1.msra.mxu0 0.0
      %796 = vmatprep.subr.mxu0 0.0
      %797 = vmatpush1.msra.mxu0 0.0
      %798 = vmatprep.subr.mxu0 0.0
      %799 = vmatpush1.msra.mxu0 0.0
      %800 = vmatprep.subr.mxu0 0.0
      %801 = vmatpush1.msra.mxu0 0.0
      %802 = vmatprep.subr.mxu0 0.0
      %803 = vmatpush1.msra.mxu0 0.0
      %804 = vmatprep.subr.mxu0 0.0
      %805 = vmatpush1.msra.mxu0 0.0
      %806 = vmatprep.subr.mxu0 0.0
      %807 = vmatpush1.msra.mxu0 0.0
      %808 = vmatprep.subr.mxu0 0.0
      %809 = vmatpush1.msra.mxu0 0.0
      %810 = vmatprep.subr.mxu0 0.0
      %811 = vmatpush1.msra.mxu0 0.0
      %812 = vmatprep.subr.mxu0 0.0
      %813 = vmatpush1.msra.mxu0 0.0
      %814 = vmatprep.mubr.f32.mxu0 0.0
      %v815 = vand.u32 %v320, 4294901760
      %816 = vmatmul.mubr.f32.gmra.mrb[0].mxu0 %v815
      %v817 = vpop.f32.mrb[0].mxu0
      %v818 = vadd.f32 %v739, %v817
      %v819 = vpop.f32.mrb[0].mxu0
      %820 = vmatprep.mubr.f32.mxu0 0.0
      %v821 = vand.u32 %v323, 4294901760
      %822 = vmatmul.mubr.f32.gmra.mrb[0].mxu0 %v821
      %v823 = vpop.f32.mrb[0].mxu0
      %v824 = vadd.f32 %v745, %v823
      %v825 = vpop.f32.mrb[0].mxu0
      %826 = vdwg.mxu0
      %vm827 = vcmp.ge.f32.partialorder %v818, 0.0
      %vm828 = vcmp.ge.f32.partialorder %v824, 0.0
      %v829 = vmul.f32 %v818, 0.1
      %v830 = vmul.f32 %v824, 0.1
      %v831 = vsel %vm827, %v818, %v829
      %v832 = vsel %vm828, %v824, %v830
      %v833 = vld [vmem:[%s4] sm:$0xff]
      %v834 = vld [vmem:[%s4 + $0x8] sm:$0xff]
      %v835 = vld [vmem:[%s5] sm:$0xff]
      %v836 = vld [vmem:[%s5 + $0x8] sm:$0xff]
      %838 = vset.pattern.permute.xlu0 0
      %839 = vperm.xlu0 %838, %v835
      %v840 = vpop.permute.xlu0 %839
      %843 = vset.pattern.permute.xlu0 0
      %844 = vperm.xlu0 %843, %v836
      %v845 = vpop.permute.xlu0 %844
      %v848 = vsel %vm318, %v833, 0
      %v851 = vsel %vm318, %v834, 0
      %853 = vmatprep.subr.mxu0 0.0
      %v854 = vand.u32 %v831, 4294901760
      %855 = vmatpush1.msra.mxu0 %v854
      %856 = vmatprep.subr.mxu0 0.0
      %v857 = vand.u32 %v832, 4294901760
      %858 = vmatpush1.msra.mxu0 %v857
      %859 = vmatprep.subr.mxu0 0.0
      %860 = vmatpush1.msra.mxu0 0.0
      %861 = vmatprep.subr.mxu0 0.0
      %862 = vmatpush1.msra.mxu0 0.0
      %863 = vmatprep.subr.mxu0 0.0
      %864 = vmatpush1.msra.mxu0 0.0
      %865 = vmatprep.subr.mxu0 0.0
      %866 = vmatpush1.msra.mxu0 0.0
      %867 = vmatprep.subr.mxu0 0.0
      %868 = vmatpush1.msra.mxu0 0.0
      %869 = vmatprep.subr.mxu0 0.0
      %870 = vmatpush1.msra.mxu0 0.0
      %871 = vmatprep.subr.mxu0 0.0
      %872 = vmatpush1.msra.mxu0 0.0
      %873 = vmatprep.subr.mxu0 0.0
      %874 = vmatpush1.msra.mxu0 0.0
      %875 = vmatprep.subr.mxu0 0.0
      %876 = vmatpush1.msra.mxu0 0.0
      %877 = vmatprep.subr.mxu0 0.0
      %878 = vmatpush1.msra.mxu0 0.0
      %879 = vmatprep.subr.mxu0 0.0
      %880 = vmatpush1.msra.mxu0 0.0
      %881 = vmatprep.subr.mxu0 0.0
      %882 = vmatpush1.msra.mxu0 0.0
      %883 = vmatprep.subr.mxu0 0.0
      %884 = vmatpush1.msra.mxu0 0.0
      %885 = vmatprep.subr.mxu0 0.0
      %886 = vmatpush1.msra.mxu0 0.0
      %887 = vmatprep.subr.mxu0 0.0
      %888 = vmatpush1.msra.mxu0 0.0
      %889 = vmatprep.subr.mxu0 0.0
      %890 = vmatpush1.msra.mxu0 0.0
      %891 = vmatprep.subr.mxu0 0.0
      %892 = vmatpush1.msra.mxu0 0.0
      %893 = vmatprep.subr.mxu0 0.0
      %894 = vmatpush1.msra.mxu0 0.0
      %895 = vmatprep.subr.mxu0 0.0
      %896 = vmatpush1.msra.mxu0 0.0
      %897 = vmatprep.subr.mxu0 0.0
      %898 = vmatpush1.msra.mxu0 0.0
      %899 = vmatprep.subr.mxu0 0.0
      %900 = vmatpush1.msra.mxu0 0.0
      %901 = vmatprep.subr.mxu0 0.0
      %902 = vmatpush1.msra.mxu0 0.0
      %903 = vmatprep.subr.mxu0 0.0
      %904 = vmatpush1.msra.mxu0 0.0
      %905 = vmatprep.subr.mxu0 0.0
      %906 = vmatpush1.msra.mxu0 0.0
      %907 = vmatprep.subr.mxu0 0.0
      %908 = vmatpush1.msra.mxu0 0.0
      %909 = vmatprep.subr.mxu0 0.0
      %910 = vmatpush1.msra.mxu0 0.0
      %911 = vmatprep.subr.mxu0 0.0
      %912 = vmatpush1.msra.mxu0 0.0
      %913 = vmatprep.subr.mxu0 0.0
      %914 = vmatpush1.msra.mxu0 0.0
      %915 = vmatprep.subr.mxu0 0.0
      %916 = vmatpush1.msra.mxu0 0.0
      %917 = vmatprep.subr.mxu0 0.0
      %918 = vmatpush1.msra.mxu0 0.0
      %919 = vmatprep.mubr.f32.mxu0 0.0
      %v920 = vand.u32 %v848, 4294901760
      %v921 = vsub.f32 %v848, %v920
      %v922 = vand.u32 %v921, 4294901760
      %v923 = vsub.f32 %v921, %v922
      %v924 = vand.u32 %v923, 4294901760
      %925 = vmatmul.mubr.f32.gmra.mrb[0].mxu0 %v924
      %v926 = vpop.f32.mrb[0].mxu0
      %v927 = vadd.f32 %v840, %v926
      %v928 = vpop.f32.mrb[0].mxu0
      %929 = vmatprep.mubr.f32.mxu0 0.0
      %v930 = vand.u32 %v851, 4294901760
      %v931 = vsub.f32 %v851, %v930
      %v932 = vand.u32 %v931, 4294901760
      %v933 = vsub.f32 %v931, %v932
      %v934 = vand.u32 %v933, 4294901760
      %935 = vmatmul.mubr.f32.gmra.mrb[0].mxu0 %v934
      %v936 = vpop.f32.mrb[0].mxu0
      %v937 = vadd.f32 %v845, %v936
      %v938 = vpop.f32.mrb[0].mxu0
      %939 = vdwg.mxu0
      %940 = vmatprep.subr.mxu0 0.0
      %v941 = vand.u32 %v831, 4294901760
      %v942 = vsub.f32 %v831, %v941
      %v943 = vand.u32 %v942, 4294901760
      %v944 = vsub.f32 %v942, %v943
      %v945 = vand.u32 %v944, 4294901760
      %946 = vmatpush1.msra.mxu0 %v945
      %947 = vmatprep.subr.mxu0 0.0
      %v948 = vand.u32 %v832, 4294901760
      %v949 = vsub.f32 %v832, %v948
      %v950 = vand.u32 %v949, 4294901760
      %v951 = vsub.f32 %v949, %v950
      %v952 = vand.u32 %v951, 4294901760
      %953 = vmatpush1.msra.mxu0 %v952
      %954 = vmatprep.subr.mxu0 0.0
      %955 = vmatpush1.msra.mxu0 0.0
      %956 = vmatprep.subr.mxu0 0.0
      %957 = vmatpush1.msra.mxu0 0.0
      %958 = vmatprep.subr.mxu0 0.0
      %959 = vmatpush1.msra.mxu0 0.0
      %960 = vmatprep.subr.mxu0 0.0
      %961 = vmatpush1.msra.mxu0 0.0
      %962 = vmatprep.subr.mxu0 0.0
      %963 = vmatpush1.msra.mxu0 0.0
      %964 = vmatprep.subr.mxu0 0.0
      %965 = vmatpush1.msra.mxu0 0.0
      %966 = vmatprep.subr.mxu0 0.0
      %967 = vmatpush1.msra.mxu0 0.0
      %968 = vmatprep.subr.mxu0 0.0
      %969 = vmatpush1.msra.mxu0 0.0
      %970 = vmatprep.subr.mxu0 0.0
      %971 = vmatpush1.msra.mxu0 0.0
      %972 = vmatprep.subr.mxu0 0.0
      %973 = vmatpush1.msra.mxu0 0.0
      %974 = vmatprep.subr.mxu0 0.0
      %975 = vmatpush1.msra.mxu0 0.0
      %976 = vmatprep.subr.mxu0 0.0
      %977 = vmatpush1.msra.mxu0 0.0
      %978 = vmatprep.subr.mxu0 0.0
      %979 = vmatpush1.msra.mxu0 0.0
      %980 = vmatprep.subr.mxu0 0.0
      %981 = vmatpush1.msra.mxu0 0.0
      %982 = vmatprep.subr.mxu0 0.0
      %983 = vmatpush1.msra.mxu0 0.0
      %984 = vmatprep.subr.mxu0 0.0
      %985 = vmatpush1.msra.mxu0 0.0
      %986 = vmatprep.subr.mxu0 0.0
      %987 = vmatpush1.msra.mxu0 0.0
      %988 = vmatprep.subr.mxu0 0.0
      %989 = vmatpush1.msra.mxu0 0.0
      %990 = vmatprep.subr.mxu0 0.0
      %991 = vmatpush1.msra.mxu0 0.0
      %992 = vmatprep.subr.mxu0 0.0
      %993 = vmatpush1.msra.mxu0 0.0
      %994 = vmatprep.subr.mxu0 0.0
      %995 = vmatpush1.msra.mxu0 0.0
      %996 = vmatprep.subr.mxu0 0.0
      %997 = vmatpush1.msra.mxu0 0.0
      %998 = vmatprep.subr.mxu0 0.0
      %999 = vmatpush1.msra.mxu0 0.0
      %1000 = vmatprep.subr.mxu0 0.0
      %1001 = vmatpush1.msra.mxu0 0.0
      %1002 = vmatprep.subr.mxu0 0.0
      %1003 = vmatpush1.msra.mxu0 0.0
      %1004 = vmatprep.subr.mxu0 0.0
      %1005 = vmatpush1.msra.mxu0 0.0
      %1006 = vmatprep.subr.mxu0 0.0
      %1007 = vmatpush1.msra.mxu0 0.0
      %1008 = vmatprep.subr.mxu0 0.0
      %1009 = vmatpush1.msra.mxu0 0.0
      %1010 = vmatprep.subr.mxu0 0.0
      %1011 = vmatpush1.msra.mxu0 0.0
      %1012 = vmatprep.subr.mxu0 0.0
      %1013 = vmatpush1.msra.mxu0 0.0
      %1014 = vmatprep.mubr.f32.mxu0 0.0
      %v1015 = vand.u32 %v848, 4294901760
      %1016 = vmatmul.mubr.f32.gmra.mrb[0].mxu0 %v1015
      %v1017 = vpop.f32.mrb[0].mxu0
      %v1018 = vadd.f32 %v927, %v1017
      %v1019 = vpop.f32.mrb[0].mxu0
      %1020 = vmatprep.mubr.f32.mxu0 0.0
      %v1021 = vand.u32 %v851, 4294901760
      %1022 = vmatmul.mubr.f32.gmra.mrb[0].mxu0 %v1021
      %v1023 = vpop.f32.mrb[0].mxu0
      %v1024 = vadd.f32 %v937, %v1023
      %v1025 = vpop.f32.mrb[0].mxu0
      %1026 = vdwg.mxu0
      %1027 = vmatprep.subr.mxu0 0.0
      %v1028 = vand.u32 %v831, 4294901760
      %v1029 = vsub.f32 %v831, %v1028
      %1030 = vmatpush1.msra.mxu0 %v1029
      %1031 = vmatprep.subr.mxu0 0.0
      %v1032 = vand.u32 %v832, 4294901760
      %v1033 = vsub.f32 %v832, %v1032
      %1034 = vmatpush1.msra.mxu0 %v1033
      %1035 = vmatprep.subr.mxu0 0.0
      %1036 = vmatpush1.msra.mxu0 0.0
      %1037 = vmatprep.subr.mxu0 0.0
      %1038 = vmatpush1.msra.mxu0 0.0
      %1039 = vmatprep.subr.mxu0 0.0
      %1040 = vmatpush1.msra.mxu0 0.0
      %1041 = vmatprep.subr.mxu0 0.0
      %1042 = vmatpush1.msra.mxu0 0.0
      %1043 = vmatprep.subr.mxu0 0.0
      %1044 = vmatpush1.msra.mxu0 0.0
      %1045 = vmatprep.subr.mxu0 0.0
      %1046 = vmatpush1.msra.mxu0 0.0
      %1047 = vmatprep.subr.mxu0 0.0
      %1048 = vmatpush1.msra.mxu0 0.0
      %1049 = vmatprep.subr.mxu0 0.0
      %1050 = vmatpush1.msra.mxu0 0.0
      %1051 = vmatprep.subr.mxu0 0.0
      %1052 = vmatpush1.msra.mxu0 0.0
      %1053 = vmatprep.subr.mxu0 0.0
      %1054 = vmatpush1.msra.mxu0 0.0
      %1055 = vmatprep.subr.mxu0 0.0
      %1056 = vmatpush1.msra.mxu0 0.0
      %1057 = vmatprep.subr.mxu0 0.0
      %1058 = vmatpush1.msra.mxu0 0.0
      %1059 = vmatprep.subr.mxu0 0.0
      %1060 = vmatpush1.msra.mxu0 0.0
      %1061 = vmatprep.subr.mxu0 0.0
      %1062 = vmatpush1.msra.mxu0 0.0
      %1063 = vmatprep.subr.mxu0 0.0
      %1064 = vmatpush1.msra.mxu0 0.0
      %1065 = vmatprep.subr.mxu0 0.0
      %1066 = vmatpush1.msra.mxu0 0.0
      %1067 = vmatprep.subr.mxu0 0.0
      %1068 = vmatpush1.msra.mxu0 0.0
      %1069 = vmatprep.subr.mxu0 0.0
      %1070 = vmatpush1.msra.mxu0 0.0
      %1071 = vmatprep.subr.mxu0 0.0
      %1072 = vmatpush1.msra.mxu0 0.0
      %1073 = vmatprep.subr.mxu0 0.0
      %1074 = vmatpush1.msra.mxu0 0.0
      %1075 = vmatprep.subr.mxu0 0.0
      %1076 = vmatpush1.msra.mxu0 0.0
      %1077 = vmatprep.subr.mxu0 0.0
      %1078 = vmatpush1.msra.mxu0 0.0
      %1079 = vmatprep.subr.mxu0 0.0
      %1080 = vmatpush1.msra.mxu0 0.0
      %1081 = vmatprep.subr.mxu0 0.0
      %1082 = vmatpush1.msra.mxu0 0.0
      %1083 = vmatprep.subr.mxu0 0.0
      %1084 = vmatpush1.msra.mxu0 0.0
      %1085 = vmatprep.subr.mxu0 0.0
      %1086 = vmatpush1.msra.mxu0 0.0
      %1087 = vmatprep.subr.mxu0 0.0
      %1088 = vmatpush1.msra.mxu0 0.0
      %1089 = vmatprep.subr.mxu0 0.0
      %1090 = vmatpush1.msra.mxu0 0.0
      %1091 = vmatprep.subr.mxu0 0.0
      %1092 = vmatpush1.msra.mxu0 0.0
      %1093 = vmatprep.subr.mxu0 0.0
      %1094 = vmatpush1.msra.mxu0 0.0
      %1095 = vmatprep.mubr.f32.mxu0 0.0
      %v1096 = vand.u32 %v848, 4294901760
      %v1097 = vsub.f32 %v848, %v1096
      %1098 = vmatmul.mubr.f32.gmra.mrb[0].mxu0 %v1097
      %v1099 = vpop.f32.mrb[0].mxu0
      %v1100 = vadd.f32 %v1018, %v1099
      %v1101 = vpop.f32.mrb[0].mxu0
      %1102 = vmatprep.mubr.f32.mxu0 0.0
      %v1103 = vand.u32 %v851, 4294901760
      %v1104 = vsub.f32 %v851, %v1103
      %1105 = vmatmul.mubr.f32.gmra.mrb[0].mxu0 %v1104
      %v1106 = vpop.f32.mrb[0].mxu0
      %v1107 = vadd.f32 %v1024, %v1106
      %v1108 = vpop.f32.mrb[0].mxu0
      %1109 = vdwg.mxu0
      %1110 = vmatprep.subr.mxu0 0.0
      %v1111 = vand.u32 %v831, 4294901760
      %1112 = vmatpush1.msra.mxu0 %v1111
      %1113 = vmatprep.subr.mxu0 0.0
      %v1114 = vand.u32 %v832, 4294901760
      %1115 = vmatpush1.msra.mxu0 %v1114
      %1116 = vmatprep.subr.mxu0 0.0
      %1117 = vmatpush1.msra.mxu0 0.0
      %1118 = vmatprep.subr.mxu0 0.0
      %1119 = vmatpush1.msra.mxu0 0.0
      %1120 = vmatprep.subr.mxu0 0.0
      %1121 = vmatpush1.msra.mxu0 0.0
      %1122 = vmatprep.subr.mxu0 0.0
      %1123 = vmatpush1.msra.mxu0 0.0
      %1124 = vmatprep.subr.mxu0 0.0
      %1125 = vmatpush1.msra.mxu0 0.0
      %1126 = vmatprep.subr.mxu0 0.0
      %1127 = vmatpush1.msra.mxu0 0.0
      %1128 = vmatprep.subr.mxu0 0.0
      %1129 = vmatpush1.msra.mxu0 0.0
      %1130 = vmatprep.subr.mxu0 0.0
      %1131 = vmatpush1.msra.mxu0 0.0
      %1132 = vmatprep.subr.mxu0 0.0
      %1133 = vmatpush1.msra.mxu0 0.0
      %1134 = vmatprep.subr.mxu0 0.0
      %1135 = vmatpush1.msra.mxu0 0.0
      %1136 = vmatprep.subr.mxu0 0.0
      %1137 = vmatpush1.msra.mxu0 0.0
      %1138 = vmatprep.subr.mxu0 0.0
      %1139 = vmatpush1.msra.mxu0 0.0
      %1140 = vmatprep.subr.mxu0 0.0
      %1141 = vmatpush1.msra.mxu0 0.0
      %1142 = vmatprep.subr.mxu0 0.0
      %1143 = vmatpush1.msra.mxu0 0.0
      %1144 = vmatprep.subr.mxu0 0.0
      %1145 = vmatpush1.msra.mxu0 0.0
      %1146 = vmatprep.subr.mxu0 0.0
      %1147 = vmatpush1.msra.mxu0 0.0
      %1148 = vmatprep.subr.mxu0 0.0
      %1149 = vmatpush1.msra.mxu0 0.0
      %1150 = vmatprep.subr.mxu0 0.0
      %1151 = vmatpush1.msra.mxu0 0.0
      %1152 = vmatprep.subr.mxu0 0.0
      %1153 = vmatpush1.msra.mxu0 0.0
      %1154 = vmatprep.subr.mxu0 0.0
      %1155 = vmatpush1.msra.mxu0 0.0
      %1156 = vmatprep.subr.mxu0 0.0
      %1157 = vmatpush1.msra.mxu0 0.0
      %1158 = vmatprep.subr.mxu0 0.0
      %1159 = vmatpush1.msra.mxu0 0.0
      %1160 = vmatprep.subr.mxu0 0.0
      %1161 = vmatpush1.msra.mxu0 0.0
      %1162 = vmatprep.subr.mxu0 0.0
      %1163 = vmatpush1.msra.mxu0 0.0
      %1164 = vmatprep.subr.mxu0 0.0
      %1165 = vmatpush1.msra.mxu0 0.0
      %1166 = vmatprep.subr.mxu0 0.0
      %1167 = vmatpush1.msra.mxu0 0.0
      %1168 = vmatprep.subr.mxu0 0.0
      %1169 = vmatpush1.msra.mxu0 0.0
      %1170 = vmatprep.subr.mxu0 0.0
      %1171 = vmatpush1.msra.mxu0 0.0
      %1172 = vmatprep.subr.mxu0 0.0
      %1173 = vmatpush1.msra.mxu0 0.0
      %1174 = vmatprep.subr.mxu0 0.0
      %1175 = vmatpush1.msra.mxu0 0.0
      %1176 = vmatprep.mubr.f32.mxu0 0.0
      %v1177 = vand.u32 %v848, 4294901760
      %v1178 = vsub.f32 %v848, %v1177
      %v1179 = vand.u32 %v1178, 4294901760
      %1180 = vmatmul.mubr.f32.gmra.mrb[0].mxu0 %v1179
      %v1181 = vpop.f32.mrb[0].mxu0
      %v1182 = vadd.f32 %v1100, %v1181
      %v1183 = vpop.f32.mrb[0].mxu0
      %1184 = vmatprep.mubr.f32.mxu0 0.0
      %v1185 = vand.u32 %v851, 4294901760
      %v1186 = vsub.f32 %v851, %v1185
      %v1187 = vand.u32 %v1186, 4294901760
      %1188 = vmatmul.mubr.f32.gmra.mrb[0].mxu0 %v1187
      %v1189 = vpop.f32.mrb[0].mxu0
      %v1190 = vadd.f32 %v1107, %v1189
      %v1191 = vpop.f32.mrb[0].mxu0
      %1192 = vdwg.mxu0
      %1193 = vmatprep.subr.mxu0 0.0
      %v1194 = vand.u32 %v831, 4294901760
      %v1195 = vsub.f32 %v831, %v1194
      %v1196 = vand.u32 %v1195, 4294901760
      %1197 = vmatpush1.msra.mxu0 %v1196
      %1198 = vmatprep.subr.mxu0 0.0
      %v1199 = vand.u32 %v832, 4294901760
      %v1200 = vsub.f32 %v832, %v1199
      %v1201 = vand.u32 %v1200, 4294901760
      %1202 = vmatpush1.msra.mxu0 %v1201
      %1203 = vmatprep.subr.mxu0 0.0
      %1204 = vmatpush1.msra.mxu0 0.0
      %1205 = vmatprep.subr.mxu0 0.0
      %1206 = vmatpush1.msra.mxu0 0.0
      %1207 = vmatprep.subr.mxu0 0.0
      %1208 = vmatpush1.msra.mxu0 0.0
      %1209 = vmatprep.subr.mxu0 0.0
      %1210 = vmatpush1.msra.mxu0 0.0
      %1211 = vmatprep.subr.mxu0 0.0
      %1212 = vmatpush1.msra.mxu0 0.0
      %1213 = vmatprep.subr.mxu0 0.0
      %1214 = vmatpush1.msra.mxu0 0.0
      %1215 = vmatprep.subr.mxu0 0.0
      %1216 = vmatpush1.msra.mxu0 0.0
      %1217 = vmatprep.subr.mxu0 0.0
      %1218 = vmatpush1.msra.mxu0 0.0
      %1219 = vmatprep.subr.mxu0 0.0
      %1220 = vmatpush1.msra.mxu0 0.0
      %1221 = vmatprep.subr.mxu0 0.0
      %1222 = vmatpush1.msra.mxu0 0.0
      %1223 = vmatprep.subr.mxu0 0.0
      %1224 = vmatpush1.msra.mxu0 0.0
      %1225 = vmatprep.subr.mxu0 0.0
      %1226 = vmatpush1.msra.mxu0 0.0
      %1227 = vmatprep.subr.mxu0 0.0
      %1228 = vmatpush1.msra.mxu0 0.0
      %1229 = vmatprep.subr.mxu0 0.0
      %1230 = vmatpush1.msra.mxu0 0.0
      %1231 = vmatprep.subr.mxu0 0.0
      %1232 = vmatpush1.msra.mxu0 0.0
      %1233 = vmatprep.subr.mxu0 0.0
      %1234 = vmatpush1.msra.mxu0 0.0
      %1235 = vmatprep.subr.mxu0 0.0
      %1236 = vmatpush1.msra.mxu0 0.0
      %1237 = vmatprep.subr.mxu0 0.0
      %1238 = vmatpush1.msra.mxu0 0.0
      %1239 = vmatprep.subr.mxu0 0.0
      %1240 = vmatpush1.msra.mxu0 0.0
      %1241 = vmatprep.subr.mxu0 0.0
      %1242 = vmatpush1.msra.mxu0 0.0
      %1243 = vmatprep.subr.mxu0 0.0
      %1244 = vmatpush1.msra.mxu0 0.0
      %1245 = vmatprep.subr.mxu0 0.0
      %1246 = vmatpush1.msra.mxu0 0.0
      %1247 = vmatprep.subr.mxu0 0.0
      %1248 = vmatpush1.msra.mxu0 0.0
      %1249 = vmatprep.subr.mxu0 0.0
      %1250 = vmatpush1.msra.mxu0 0.0
      %1251 = vmatprep.subr.mxu0 0.0
      %1252 = vmatpush1.msra.mxu0 0.0
      %1253 = vmatprep.subr.mxu0 0.0
      %1254 = vmatpush1.msra.mxu0 0.0
      %1255 = vmatprep.subr.mxu0 0.0
      %1256 = vmatpush1.msra.mxu0 0.0
      %1257 = vmatprep.subr.mxu0 0.0
      %1258 = vmatpush1.msra.mxu0 0.0
      %1259 = vmatprep.subr.mxu0 0.0
      %1260 = vmatpush1.msra.mxu0 0.0
      %1261 = vmatprep.subr.mxu0 0.0
      %1262 = vmatpush1.msra.mxu0 0.0
      %1263 = vmatprep.mubr.f32.mxu0 0.0
      %v1264 = vand.u32 %v848, 4294901760
      %1265 = vmatmul.mubr.f32.gmra.mrb[0].mxu0 %v1264
      %v1266 = vpop.f32.mrb[0].mxu0
      %v1267 = vadd.f32 %v1182, %v1266
      %v1268 = vpop.f32.mrb[0].mxu0
      %1269 = vmatprep.mubr.f32.mxu0 0.0
      %v1270 = vand.u32 %v851, 4294901760
      %1271 = vmatmul.mubr.f32.gmra.mrb[0].mxu0 %v1270
      %v1272 = vpop.f32.mrb[0].mxu0
      %v1273 = vadd.f32 %v1190, %v1272
      %v1274 = vpop.f32.mrb[0].mxu0
      %1275 = vdwg.mxu0
      %1276 = vmatprep.subr.mxu0 0.0
      %v1277 = vand.u32 %v831, 4294901760
      %1278 = vmatpush1.msra.mxu0 %v1277
      %1279 = vmatprep.subr.mxu0 0.0
      %v1280 = vand.u32 %v832, 4294901760
      %1281 = vmatpush1.msra.mxu0 %v1280
      %1282 = vmatprep.subr.mxu0 0.0
      %1283 = vmatpush1.msra.mxu0 0.0
      %1284 = vmatprep.subr.mxu0 0.0
      %1285 = vmatpush1.msra.mxu0 0.0
      %1286 = vmatprep.subr.mxu0 0.0
      %1287 = vmatpush1.msra.mxu0 0.0
      %1288 = vmatprep.subr.mxu0 0.0
      %1289 = vmatpush1.msra.mxu0 0.0
      %1290 = vmatprep.subr.mxu0 0.0
      %1291 = vmatpush1.msra.mxu0 0.0
      %1292 = vmatprep.subr.mxu0 0.0
      %1293 = vmatpush1.msra.mxu0 0.0
      %1294 = vmatprep.subr.mxu0 0.0
      %1295 = vmatpush1.msra.mxu0 0.0
      %1296 = vmatprep.subr.mxu0 0.0
      %1297 = vmatpush1.msra.mxu0 0.0
      %1298 = vmatprep.subr.mxu0 0.0
      %1299 = vmatpush1.msra.mxu0 0.0
      %1300 = vmatprep.subr.mxu0 0.0
      %1301 = vmatpush1.msra.mxu0 0.0
      %1302 = vmatprep.subr.mxu0 0.0
      %1303 = vmatpush1.msra.mxu0 0.0
      %1304 = vmatprep.subr.mxu0 0.0
      %1305 = vmatpush1.msra.mxu0 0.0
      %1306 = vmatprep.subr.mxu0 0.0
      %1307 = vmatpush1.msra.mxu0 0.0
      %1308 = vmatprep.subr.mxu0 0.0
      %1309 = vmatpush1.msra.mxu0 0.0
      %1310 = vmatprep.subr.mxu0 0.0
      %1311 = vmatpush1.msra.mxu0 0.0
      %1312 = vmatprep.subr.mxu0 0.0
      %1313 = vmatpush1.msra.mxu0 0.0
      %1314 = vmatprep.subr.mxu0 0.0
      %1315 = vmatpush1.msra.mxu0 0.0
      %1316 = vmatprep.subr.mxu0 0.0
      %1317 = vmatpush1.msra.mxu0 0.0
      %1318 = vmatprep.subr.mxu0 0.0
      %1319 = vmatpush1.msra.mxu0 0.0
      %1320 = vmatprep.subr.mxu0 0.0
      %1321 = vmatpush1.msra.mxu0 0.0
      %1322 = vmatprep.subr.mxu0 0.0
      %1323 = vmatpush1.msra.mxu0 0.0
      %1324 = vmatprep.subr.mxu0 0.0
      %1325 = vmatpush1.msra.mxu0 0.0
      %1326 = vmatprep.subr.mxu0 0.0
      %1327 = vmatpush1.msra.mxu0 0.0
      %1328 = vmatprep.subr.mxu0 0.0
      %1329 = vmatpush1.msra.mxu0 0.0
      %1330 = vmatprep.subr.mxu0 0.0
      %1331 = vmatpush1.msra.mxu0 0.0
      %1332 = vmatprep.subr.mxu0 0.0
      %1333 = vmatpush1.msra.mxu0 0.0
      %1334 = vmatprep.subr.mxu0 0.0
      %1335 = vmatpush1.msra.mxu0 0.0
      %1336 = vmatprep.subr.mxu0 0.0
      %1337 = vmatpush1.msra.mxu0 0.0
      %1338 = vmatprep.subr.mxu0 0.0
      %1339 = vmatpush1.msra.mxu0 0.0
      %1340 = vmatprep.subr.mxu0 0.0
      %1341 = vmatpush1.msra.mxu0 0.0
      %1342 = vmatprep.mubr.f32.mxu0 0.0
      %v1343 = vand.u32 %v848, 4294901760
      %1344 = vmatmul.mubr.f32.gmra.mrb[0].mxu0 %v1343
      %v1345 = vpop.f32.mrb[0].mxu0
      %v1346 = vadd.f32 %v1267, %v1345
      %v1347 = vpop.f32.mrb[0].mxu0
      %1348 = vmatprep.mubr.f32.mxu0 0.0
      %v1349 = vand.u32 %v851, 4294901760
      %1350 = vmatmul.mubr.f32.gmra.mrb[0].mxu0 %v1349
      %v1351 = vpop.f32.mrb[0].mxu0
      %v1352 = vadd.f32 %v1273, %v1351
      %v1353 = vpop.f32.mrb[0].mxu0
      %1354 = vdwg.mxu0
      %1355 = vst [vmem:[%s297] sm:$0xff] %v1346
      %1356 = vst [vmem:[%s301] sm:$0xff] %v1352
      %p1357 = scmp.lt.s32.totalorder %s19, 2
      %s1358 = scalar_select %p1357, %s19, 2
      %s1359 = smul.addr %s1358, 8
      %s1360 = scalar_lea.vmem %s6, %s1359
      %p1361 = scmp.lt.s32.totalorder %s19, 2
      %s1362 = scalar_select %p1361, %s19, 2
      %s1363 = smul.addr %s1362, 8
      %s1364 = scalar_lea.vmem %s7, %s1363
      // Predicated region
      $region45: #{fourier_shift_forward.2} parent=43 // pred_check
        %p1365 = pneg %p173
      $region46: #{fourier_shift_forward.2} parent=43 // pred_check_branch
        %1367 = sbr.rel (%p1365) target = $region48
      $region47: #{fourier_shift_forward.2} parent=43 // pred_region
        _
      $region48: #{fourier_shift_forward.2} parent=43 // pred_fallthru
        _
      // Predicated region
      $region49: #{fourier_shift_forward.2} parent=43 // pred_check
        %p1368 = pneg %p199
      $region50: #{fourier_shift_forward.2} parent=43 // pred_check_branch
        %1370 = sbr.rel (%p1368) target = $region52
      $region51: #{fourier_shift_forward.2} parent=43 // pred_region
        _
      $region52: #{fourier_shift_forward.2} parent=43 // pred_fallthru
        _
    $region44: #{fourier_shift_forward.2} parent=5 // pred_fallthru
      _
    %p1371 = scmp.le.s32.totalorder 2, %s14
    // Predicated region
    $region53: #{fourier_shift_forward.2} parent=5 // pred_check
      %p1372 = pneg %p1371
    $region54: #{fourier_shift_forward.2} parent=5 // pred_check_branch
      %1374 = sbr.rel (%p1372) target = $region56
    $region55: #{fourier_shift_forward.2} parent=5 // pred_region
      %s1375 = ssub.s32 %s14, 2
      // Predicated region
      $region57: #{fourier_shift_forward.2} parent=55 // pred_check
        %p1376 = pneg %p179
      $region58: #{fourier_shift_forward.2} parent=55 // pred_check_branch
        %1378 = sbr.rel (%p1376) target = $region60
      $region59: #{fourier_shift_forward.2} parent=55 // pred_region
        %p1379 = scmp.lt.s32.totalorder %s20, 2
        %s1380 = scalar_select %p1379, %s20, 2
        %s1381 = smul.addr %s1380, 8
        %s1382 = scalar_lea.vmem %s6, %s1381
      $region60: #{fourier_shift_forward.2} parent=55 // pred_fallthru
        _
      // Predicated region
      $region61: #{fourier_shift_forward.2} parent=55 // pred_check
        %p1383 = pneg %p205
      $region62: #{fourier_shift_forward.2} parent=55 // pred_check_branch
        %1385 = sbr.rel (%p1383) target = $region64
      $region63: #{fourier_shift_forward.2} parent=55 // pred_region
        %p1386 = scmp.lt.s32.totalorder %s20, 2
        %s1387 = scalar_select %p1386, %s20, 2
        %s1388 = smul.addr %s1387, 8
        %s1389 = scalar_lea.vmem %s7, %s1388
      $region64: #{fourier_shift_forward.2} parent=55 // pred_fallthru
        _
    $region56: #{fourier_shift_forward.2} parent=5 // pred_fallthru
      _
  $region6: #{fourier_shift_forward.2} parent=0 // loop_footer
    %s18 = sadd.s32 1, %s14
  $region7: #{fourier_shift_forward.2} parent=0 // loop_footer_branch
    %13 = sbr.rel target = $region3
  $region8: #{fourier_shift_forward.2} parent=0 // loop_exit
    _

// kernel: fourier_shift_forward.3
$region0: #{fourier_shift_forward.3}
  #allocation0 [shape = 'u32[]', space=smem, size = 0x4, offset = 0x4, fixed_abs, tag = 'smem constant byte address 0x4 - core index']
  #allocation1 [shape = 'u32[144,128]{1,0:T(1,128)}', space=vmem, size = 0x12000, scoped, tag = 'internal scratch']
  %s0 = inlined_call_operand.vmem [shape: f32[8,512], index: 0, kind: input, shape index: {}]
  %s1 = inlined_call_operand.vmem [shape: f32[8,512], index: 1, kind: input, shape index: {}, may-alias: {1,4}]
  %s2 = inlined_call_operand.vmem [shape: f32[8,8], index: 2, kind: input, shape index: {}]
  %s3 = inlined_call_operand.vmem [shape: f32[8,1], index: 3, kind: input, shape index: {}]
  %s4 = inlined_call_operand.vmem [shape: f32[8,512], index: 4, kind: output, shape index: {}, may-alias: {1,4}]
  %s5 = sld [smem:[#allocation0]]
  $region49: #{fourier_shift_forward.3} parent=0
    _
  %s7 = ssub.s32 1, %s5
  %s8 = scalar_select 0, %s7, %s5
  loop: start=0, step=1, limit=6
  $region2: #{fourier_shift_forward.3} parent=0 // loop_pre_header
    _
  $region3: #{fourier_shift_forward.3} parent=0 // loop_header
    %s10 = sphi 0, %s14
    %p11 = scmp.ge.s32.totalorder %s10, 6
    %s20 = sphi 0, %s22
    %s23 = sphi 0, %s20
    %s24 = sphi 0, %s23
    %s40 = sphi 0, %s24
    %s46 = sphi 0, %s48
    %s49 = sphi 0, %s46
    %s50 = sphi 0, %s49
    %s66 = sphi 0, %s50
    %s70 = sphi 0, %s70
    %s72 = sphi 0, %s70
    %s73 = sphi 0, %s72
    %s87 = sphi 0, %s73
    %s91 = sphi 0, %s91
    %s93 = sphi 0, %s91
    %s94 = sphi 0, %s93
    %s108 = sphi 0, %s94
    %s114 = sphi 0, %s116
    %s117 = sphi 0, %s114
    %s118 = sphi 0, %s117
    %s134 = sphi 0, %s118
  $region4: #{fourier_shift_forward.3} parent=0 // loop_header_branch
    %13 = sbr.rel (%p11) target = $region8
  $region5: #{fourier_shift_forward.3} parent=0 // loop_body
    %s15 = ssub.s32 %s10, 1
    %s16 = ssub.s32 %s10, 2
    %s17 = sadd.s32 %s10, 1
    %s18 = ssub.s32 %s10, %s17
    %p19 = scmp.eq.s32.totalorder %s18, 0
    %s21 = sadd.s32 %s20, 1
    %s22 = scalar_select %p19, %s20, %s21
    %p25 = pneg %p19
    %p26 = scmp.eq.s32.totalorder %s10, 3
    %p27 = por %p25, %p26
    %p28 = scmp.ne.s32.totalorder %s20, %s23
    %p29 = scmp.eq.s32.totalorder %s10, 0
    %p30 = por %p28, %p29
    %p31 = scmp.ne.s32.totalorder %s20, %s23
    %p32 = scmp.eq.s32.totalorder %s15, 3
    %p33 = por %p31, %p32
    %p34 = scmp.ne.s32.totalorder %s23, %s24
    %p35 = scmp.eq.s32.totalorder %s15, 0
    %p36 = por %p34, %p35
    %p37 = scmp.ne.s32.totalorder %s23, %s24
    %p38 = scmp.eq.s32.totalorder %s16, 3
    %p39 = por %p37, %p38
    %p41 = scmp.ne.s32.totalorder %s24, %s40
    %p42 = scmp.eq.s32.totalorder %s16, 0
    %p43 = por %p41, %p42
    %s44 = ssub.s32 %s10, %s17
    %p45 = scmp.eq.s32.totalorder %s44, 0
    %s47 = sadd.s32 %s46, 1
    %s48 = scalar_select %p45, %s46, %s47
    %p51 = pneg %p45
    %p52 = scmp.eq.s32.totalorder %s10, 3
    %p53 = por %p51, %p52
    %p54 = scmp.ne.s32.totalorder %s46, %s49
    %p55 = scmp.eq.s32.totalorder %s10, 0
    %p56 = por %p54, %p55
    %p57 = scmp.ne.s32.totalorder %s46, %s49
    %p58 = scmp.eq.s32.totalorder %s15, 3
    %p59 = por %p57, %p58
    %p60 = scmp.ne.s32.totalorder %s49, %s50
    %p61 = scmp.eq.s32.totalorder %s15, 0
    %p62 = por %p60, %p61
    %p63 = scmp.ne.s32.totalorder %s49, %s50
    %p64 = scmp.eq.s32.totalorder %s16, 3
    %p65 = por %p63, %p64
    %p67 = scmp.ne.s32.totalorder %s50, %s66
    %p68 = scmp.eq.s32.totalorder %s16, 0
    %p69 = por %p67, %p68
    %s71 = sadd.s32 %s70, 1
    %p74 = scmp.eq.s32.totalorder %s10, 3
    %p75 = scmp.ne.s32.totalorder %s70, %s72
    %p76 = scmp.eq.s32.totalorder %s10, 0
    %p77 = por %p75, %p76
    %p78 = scmp.ne.s32.totalorder %s70, %s72
    %p79 = scmp.eq.s32.totalorder %s15, 3
    %p80 = por %p78, %p79
    %p81 = scmp.ne.s32.totalorder %s72, %s73
    %p82 = scmp.eq.s32.totalorder %s15, 0
    %p83 = por %p81, %p82
    %p84 = scmp.ne.s32.totalorder %s72, %s73
    %p85 = scmp.eq.s32.totalorder %s16, 3
    %p86 = por %p84, %p85
    %p88 = scmp.ne.s32.totalorder %s73, %s87
    %p89 = scmp.eq.s32.totalorder %s16, 0
    %p90 = por %p88, %p89
    %s92 = sadd.s32 %s91, 1
    %p95 = scmp.eq.s32.totalorder %s10, 3
    %p96 = scmp.ne.s32.totalorder %s91, %s93
    %p97 = scmp.eq.s32.totalorder %s10, 0
    %p98 = por %p96, %p97
    %p99 = scmp.ne.s32.totalorder %s91, %s93
    %p100 = scmp.eq.s32.totalorder %s15, 3
    %p101 = por %p99, %p100
    %p102 = scmp.ne.s32.totalorder %s93, %s94
    %p103 = scmp.eq.s32.totalorder %s15, 0
    %p104 = por %p102, %p103
    %p105 = scmp.ne.s32.totalorder %s93, %s94
    %p106 = scmp.eq.s32.totalorder %s16, 3
    %p107 = por %p105, %p106
    %p109 = scmp.ne.s32.totalorder %s94, %s108
    %p110 = scmp.eq.s32.totalorder %s16, 0
    %p111 = por %p109, %p110
    %s112 = ssub.s32 %s10, %s17
    %p113 = scmp.eq.s32.totalorder %s112, 0
    %s115 = sadd.s32 %s114, 1
    %s116 = scalar_select %p113, %s114, %s115
    %p119 = pneg %p113
    %p120 = scmp.eq.s32.totalorder %s10, 3
    %p121 = por %p119, %p120
    %p122 = scmp.ne.s32.totalorder %s114, %s117
    %p123 = scmp.eq.s32.totalorder %s10, 0
    %p124 = por %p122, %p123
    %p125 = scmp.ne.s32.totalorder %s114, %s117
    %p126 = scmp.eq.s32.totalorder %s15, 3
    %p127 = por %p125, %p126
    %p128 = scmp.ne.s32.totalorder %s117, %s118
    %p129 = scmp.eq.s32.totalorder %s15, 0
    %p130 = por %p128, %p129
    %p131 = scmp.ne.s32.totalorder %s117, %s118
    %p132 = scmp.eq.s32.totalorder %s16, 3
    %p133 = por %p131, %p132
    %p135 = scmp.ne.s32.totalorder %s118, %s134
    %p136 = scmp.eq.s32.totalorder %s16, 0
    %p137 = por %p135, %p136
    %p138 = scmp.le.s32.totalorder 1, %s10
    %p139 = scmp.lt.s32.totalorder %s10, 5
    %p140 = pnand %p138, %p139
    %p141 = pneg %p140
    // Predicated region
    $region9: #{fourier_shift_forward.3} parent=5 // pred_check
      _
    $region10: #{fourier_shift_forward.3} parent=5 // pred_check_branch
      %143 = sbr.rel (%p140) target = $region12
    $region11: #{fourier_shift_forward.3} parent=5 // pred_region
      %s144 = ssub.s32 %s10, 1
      // Predicated region
      $region13: #{fourier_shift_forward.3} parent=11 // pred_check
        %p145 = pneg %p83
      $region14: #{fourier_shift_forward.3} parent=11 // pred_check_branch
        %147 = sbr.rel (%p145) target = $region16
      $region15: #{fourier_shift_forward.3} parent=11 // pred_region
        _
      $region16: #{fourier_shift_forward.3} parent=11 // pred_fallthru
        _
      // Predicated region
      $region17: #{fourier_shift_forward.3} parent=11 // pred_check
        %p148 = pneg %p104
      $region18: #{fourier_shift_forward.3} parent=11 // pred_check_branch
        %150 = sbr.rel (%p148) target = $region20
      $region19: #{fourier_shift_forward.3} parent=11 // pred_region
        _
      $region20: #{fourier_shift_forward.3} parent=11 // pred_fallthru
        _
    $region12: #{fourier_shift_forward.3} parent=5 // pred_fallthru
      _
    %p151 = scmp.lt.s32.totalorder %s10, 4
    // Predicated region
    $region21: #{fourier_shift_forward.3} parent=5 // pred_check
      %p152 = pneg %p151
    $region22: #{fourier_shift_forward.3} parent=5 // pred_check_branch
      %154 = sbr.rel (%p152) target = $region24
    $region23: #{fourier_shift_forward.3} parent=5 // pred_region
      // Predicated region
      $region25: #{fourier_shift_forward.3} parent=23 // pred_check
        %p155 = pneg %p30
      $region26: #{fourier_shift_forward.3} parent=23 // pred_check_branch
        %157 = sbr.rel (%p155) target = $region28
      $region27: #{fourier_shift_forward.3} parent=23 // pred_region
        %p158 = scmp.lt.s32.totalorder %s10, 3
        %s159 = scalar_select %p158, %s10, 3
        %s160 = smul.addr %s159, 8
        %s161 = scalar_lea.vmem %s0, %s160
      $region28: #{fourier_shift_forward.3} parent=23 // pred_fallthru
        _
      // Predicated region
      $region29: #{fourier_shift_forward.3} parent=23 // pred_check
        %p162 = pneg %p56
      $region30: #{fourier_shift_forward.3} parent=23 // pred_check_branch
        %164 = sbr.rel (%p162) target = $region32
      $region31: #{fourier_shift_forward.3} parent=23 // pred_region
        %p165 = scmp.lt.s32.totalorder %s10, 3
        %s166 = scalar_select %p165, %s10, 3
        %s167 = smul.addr %s166, 8
        %s168 = scalar_lea.vmem %s1, %s167
      $region32: #{fourier_shift_forward.3} parent=23 // pred_fallthru
        _
    $region24: #{fourier_shift_forward.3} parent=5 // pred_fallthru
      _
    %p169 = scmp.le.s32.totalorder 1, %s10
    %p170 = scmp.lt.s32.totalorder %s10, 5
    %p171 = pnand %p169, %p170
    %p172 = pneg %p171
    // Predicated region
    $region33: #{fourier_shift_forward.3} parent=5 // pred_check
      _
    $region34: #{fourier_shift_forward.3} parent=5 // pred_check_branch
      %174 = sbr.rel (%p171) target = $region36
    $region35: #{fourier_shift_forward.3} parent=5 // pred_region
      %s175 = ssub.s32 %s10, 1
      %p176 = scmp.lt.s32.totalorder %s15, 3
      %s177 = scalar_select %p176, %s15, 3
      %s178 = smul.addr %s177, 8
      %s179 = scalar_lea.vmem %s0, %s178
      %p180 = pneg %p36
      %p181 = pneg %p33
      %p182 = scmp.lt.s32.totalorder %s15, 3
      %s183 = scalar_select %p182, %s15, 3
      %s184 = smul.addr %s183, 8
      %s185 = scalar_lea.vmem %s1, %s184
      %p186 = pneg %p62
      %p187 = pneg %p59
      %p188 = pneg %p83
      %p189 = pneg %p80
      %p190 = pneg %p104
      %p191 = pneg %p101
      %p192 = pneg %p130
      %p193 = pneg %p127
      %p194 = scmp.lt.s32.totalorder %s15, 3
      %s195 = scalar_select %p194, %s15, 3
      %s196 = smul.addr %s195, 8
      %s197 = scalar_lea.vmem %s4, %s196
      %p198 = scmp.lt.s32.totalorder %s15, 3
      %s199 = scalar_select %p198, %s15, 3
      %s200 = smul.addr %s199, 8
      %s201 = scalar_lea.vmem %s0, %s200
      %p202 = scmp.lt.s32.totalorder %s15, 3
      %s203 = scalar_select %p202, %s15, 3
      %s204 = smul.addr %s203, 8
      %s205 = scalar_lea.vmem %s1, %s204
      %p206 = scmp.lt.s32.totalorder %s15, 3
      %s207 = scalar_select %p206, %s15, 3
      %s208 = smul.addr %s207, 8
      %s209 = scalar_lea.vmem %s4, %s208
      %v210 = vld [vmem:[%s2] sm:$0xff]
      %v211 = vld [vmem:[%s201] sm:$0xff]
      %v212 = vld [vmem:[%s3] sm:$0xff]
      %214 = vset.pattern.permute.xlu0 0
      %215 = vperm.xlu0 %214, %v212
      %v216 = vpop.permute.xlu0 %215
      %vm218 = vcmask 64512
      %v220 = vsel %vm218, %v210, 0
      %222 = vmatprep.subr.mxu0 0.0
      %v223 = vand.u32 %v211, 4294901760
      %224 = vmatpush1.msra.mxu0 %v223
      %225 = vmatprep.subr.mxu0 0.0
      %226 = vmatpush1.msra.mxu0 0.0
      %227 = vmatprep.subr.mxu0 0.0
      %228 = vmatpush1.msra.mxu0 0.0
      %229 = vmatprep.subr.mxu0 0.0
      %230 = vmatpush1.msra.mxu0 0.0
      %231 = vmatprep.subr.mxu0 0.0
      %232 = vmatpush1.msra.mxu0 0.0
      %233 = vmatprep.subr.mxu0 0.0
      %234 = vmatpush1.msra.mxu0 0.0
      %235 = vmatprep.subr.mxu0 0.0
      %236 = vmatpush1.msra.mxu0 0.0
      %237 = vmatprep.subr.mxu0 0.0
      %238 = vmatpush1.msra.mxu0 0.0
      %239 = vmatprep.subr.mxu0 0.0
      %240 = vmatpush1.msra.mxu0 0.0
      %241 = vmatprep.subr.mxu0 0.0
      %242 = vmatpush1.msra.mxu0 0.0
      %243 = vmatprep.subr.mxu0 0.0
      %244 = vmatpush1.msra.mxu0 0.0
      %245 = vmatprep.subr.mxu0 0.0
      %246 = vmatpush1.msra.mxu0 0.0
      %247 = vmatprep.subr.mxu0 0.0
      %248 = vmatpush1.msra.mxu0 0.0
      %249 = vmatprep.subr.mxu0 0.0
      %250 = vmatpush1.msra.mxu0 0.0
      %251 = vmatprep.subr.mxu0 0.0
      %252 = vmatpush1.msra.mxu0 0.0
      %253 = vmatprep.subr.mxu0 0.0
      %254 = vmatpush1.msra.mxu0 0.0
      %255 = vmatprep.subr.mxu0 0.0
      %256 = vmatpush1.msra.mxu0 0.0
      %257 = vmatprep.subr.mxu0 0.0
      %258 = vmatpush1.msra.mxu0 0.0
      %259 = vmatprep.subr.mxu0 0.0
      %260 = vmatpush1.msra.mxu0 0.0
      %261 = vmatprep.subr.mxu0 0.0
      %262 = vmatpush1.msra.mxu0 0.0
      %263 = vmatprep.subr.mxu0 0.0
      %264 = vmatpush1.msra.mxu0 0.0
      %265 = vmatprep.subr.mxu0 0.0
      %266 = vmatpush1.msra.mxu0 0.0
      %267 = vmatprep.subr.mxu0 0.0
      %268 = vmatpush1.msra.mxu0 0.0
      %269 = vmatprep.subr.mxu0 0.0
      %270 = vmatpush1.msra.mxu0 0.0
      %271 = vmatprep.subr.mxu0 0.0
      %272 = vmatpush1.msra.mxu0 0.0
      %273 = vmatprep.subr.mxu0 0.0
      %274 = vmatpush1.msra.mxu0 0.0
      %275 = vmatprep.subr.mxu0 0.0
      %276 = vmatpush1.msra.mxu0 0.0
      %277 = vmatprep.subr.mxu0 0.0
      %278 = vmatpush1.msra.mxu0 0.0
      %279 = vmatprep.subr.mxu0 0.0
      %280 = vmatpush1.msra.mxu0 0.0
      %281 = vmatprep.subr.mxu0 0.0
      %282 = vmatpush1.msra.mxu0 0.0
      %283 = vmatprep.subr.mxu0 0.0
      %284 = vmatpush1.msra.mxu0 0.0
      %285 = vmatprep.subr.mxu0 0.0
      %286 = vmatpush1.msra.mxu0 0.0
      %287 = vmatprep.mubr.f32.mxu0 0.0
      %v288 = vand.u32 %v220, 4294901760
      %v289 = vsub.f32 %v220, %v288
      %v290 = vand.u32 %v289, 4294901760
      %v291 = vsub.f32 %v289, %v290
      %v292 = vand.u32 %v291, 4294901760
      %293 = vmatmul.mubr.f32.gmra.mrb[0].mxu0 %v292
      %v294 = vpop.f32.mrb[0].mxu0
      %v295 = vadd.f32 %v216, %v294
      %v296 = vpop.f32.mrb[0].mxu0
      %297 = vdwg.mxu0
      %298 = vmatprep.subr.mxu0 0.0
      %v299 = vand.u32 %v211, 4294901760
      %v300 = vsub.f32 %v211, %v299
      %v301 = vand.u32 %v300, 4294901760
      %v302 = vsub.f32 %v300, %v301
      %v303 = vand.u32 %v302, 4294901760
      %304 = vmatpush1.msra.mxu0 %v303
      %305 = vmatprep.subr.mxu0 0.0
      %306 = vmatpush1.msra.mxu0 0.0
      %307 = vmatprep.subr.mxu0 0.0
      %308 = vmatpush1.msra.mxu0 0.0
      %309 = vmatprep.subr.mxu0 0.0
      %310 = vmatpush1.msra.mxu0 0.0
      %311 = vmatprep.subr.mxu0 0.0
      %312 = vmatpush1.msra.mxu0 0.0
      %313 = vmatprep.subr.mxu0 0.0
      %314 = vmatpush1.msra.mxu0 0.0
      %315 = vmatprep.subr.mxu0 0.0
      %316 = vmatpush1.msra.mxu0 0.0
      %317 = vmatprep.subr.mxu0 0.0
      %318 = vmatpush1.msra.mxu0 0.0
      %319 = vmatprep.subr.mxu0 0.0
      %320 = vmatpush1.msra.mxu0 0.0
      %321 = vmatprep.subr.mxu0 0.0
      %322 = vmatpush1.msra.mxu0 0.0
      %323 = vmatprep.subr.mxu0 0.0
      %324 = vmatpush1.msra.mxu0 0.0
      %325 = vmatprep.subr.mxu0 0.0
      %326 = vmatpush1.msra.mxu0 0.0
      %327 = vmatprep.subr.mxu0 0.0
      %328 = vmatpush1.msra.mxu0 0.0
      %329 = vmatprep.subr.mxu0 0.0
      %330 = vmatpush1.msra.mxu0 0.0
      %331 = vmatprep.subr.mxu0 0.0
      %332 = vmatpush1.msra.mxu0 0.0
      %333 = vmatprep.subr.mxu0 0.0
      %334 = vmatpush1.msra.mxu0 0.0
      %335 = vmatprep.subr.mxu0 0.0
      %336 = vmatpush1.msra.mxu0 0.0
      %337 = vmatprep.subr.mxu0 0.0
      %338 = vmatpush1.msra.mxu0 0.0
      %339 = vmatprep.subr.mxu0 0.0
      %340 = vmatpush1.msra.mxu0 0.0
      %341 = vmatprep.subr.mxu0 0.0
      %342 = vmatpush1.msra.mxu0 0.0
      %343 = vmatprep.subr.mxu0 0.0
      %344 = vmatpush1.msra.mxu0 0.0
      %345 = vmatprep.subr.mxu0 0.0
      %346 = vmatpush1.msra.mxu0 0.0
      %347 = vmatprep.subr.mxu0 0.0
      %348 = vmatpush1.msra.mxu0 0.0
      %349 = vmatprep.subr.mxu0 0.0
      %350 = vmatpush1.msra.mxu0 0.0
      %351 = vmatprep.subr.mxu0 0.0
      %352 = vmatpush1.msra.mxu0 0.0
      %353 = vmatprep.subr.mxu0 0.0
      %354 = vmatpush1.msra.mxu0 0.0
      %355 = vmatprep.subr.mxu0 0.0
      %356 = vmatpush1.msra.mxu0 0.0
      %357 = vmatprep.subr.mxu0 0.0
      %358 = vmatpush1.msra.mxu0 0.0
      %359 = vmatprep.subr.mxu0 0.0
      %360 = vmatpush1.msra.mxu0 0.0
      %361 = vmatprep.subr.mxu0 0.0
      %362 = vmatpush1.msra.mxu0 0.0
      %363 = vmatprep.subr.mxu0 0.0
      %364 = vmatpush1.msra.mxu0 0.0
      %365 = vmatprep.subr.mxu0 0.0
      %366 = vmatpush1.msra.mxu0 0.0
      %367 = vmatprep.mubr.f32.mxu0 0.0
      %v368 = vand.u32 %v220, 4294901760
      %369 = vmatmul.mubr.f32.gmra.mrb[0].mxu0 %v368
      %v370 = vpop.f32.mrb[0].mxu0
      %v371 = vadd.f32 %v295, %v370
      %v372 = vpop.f32.mrb[0].mxu0
      %373 = vdwg.mxu0
      %374 = vmatprep.subr.mxu0 0.0
      %v375 = vand.u32 %v211, 4294901760
      %v376 = vsub.f32 %v211, %v375
      %377 = vmatpush1.msra.mxu0 %v376
      %378 = vmatprep.subr.mxu0 0.0
      %379 = vmatpush1.msra.mxu0 0.0
      %380 = vmatprep.subr.mxu0 0.0
      %381 = vmatpush1.msra.mxu0 0.0
      %382 = vmatprep.subr.mxu0 0.0
      %383 = vmatpush1.msra.mxu0 0.0
      %384 = vmatprep.subr.mxu0 0.0
      %385 = vmatpush1.msra.mxu0 0.0
      %386 = vmatprep.subr.mxu0 0.0
      %387 = vmatpush1.msra.mxu0 0.0
      %388 = vmatprep.subr.mxu0 0.0
      %389 = vmatpush1.msra.mxu0 0.0
      %390 = vmatprep.subr.mxu0 0.0
      %391 = vmatpush1.msra.mxu0 0.0
      %392 = vmatprep.subr.mxu0 0.0
      %393 = vmatpush1.msra.mxu0 0.0
      %394 = vmatprep.subr.mxu0 0.0
      %395 = vmatpush1.msra.mxu0 0.0
      %396 = vmatprep.subr.mxu0 0.0
      %397 = vmatpush1.msra.mxu0 0.0
      %398 = vmatprep.subr.mxu0 0.0
      %399 = vmatpush1.msra.mxu0 0.0
      %400 = vmatprep.subr.mxu0 0.0
      %401 = vmatpush1.msra.mxu0 0.0
      %402 = vmatprep.subr.mxu0 0.0
      %403 = vmatpush1.msra.mxu0 0.0
      %404 = vmatprep.subr.mxu0 0.0
      %405 = vmatpush1.msra.mxu0 0.0
      %406 = vmatprep.subr.mxu0 0.0
      %407 = vmatpush1.msra.mxu0 0.0
      %408 = vmatprep.subr.mxu0 0.0
      %409 = vmatpush1.msra.mxu0 0.0
      %410 = vmatprep.subr.mxu0 0.0
      %411 = vmatpush1.msra.mxu0 0.0
      %412 = vmatprep.subr.mxu0 0.0
      %413 = vmatpush1.msra.mxu0 0.0
      %414 = vmatprep.subr.mxu0 0.0
      %415 = vmatpush1.msra.mxu0 0.0
      %416 = vmatprep.subr.mxu0 0.0
      %417 = vmatpush1.msra.mxu0 0.0
      %418 = vmatprep.subr.mxu0 0.0
      %419 = vmatpush1.msra.mxu0 0.0
      %420 = vmatprep.subr.mxu0 0.0
      %421 = vmatpush1.msra.mxu0 0.0
      %422 = vmatprep.subr.mxu0 0.0
      %423 = vmatpush1.msra.mxu0 0.0
      %424 = vmatprep.subr.mxu0 0.0
      %425 = vmatpush1.msra.mxu0 0.0
      %426 = vmatprep.subr.mxu0 0.0
      %427 = vmatpush1.msra.mxu0 0.0
      %428 = vmatprep.subr.mxu0 0.0
      %429 = vmatpush1.msra.mxu0 0.0
      %430 = vmatprep.subr.mxu0 0.0
      %431 = vmatpush1.msra.mxu0 0.0
      %432 = vmatprep.subr.mxu0 0.0
      %433 = vmatpush1.msra.mxu0 0.0
      %434 = vmatprep.subr.mxu0 0.0
      %435 = vmatpush1.msra.mxu0 0.0
      %436 = vmatprep.subr.mxu0 0.0
      %437 = vmatpush1.msra.mxu0 0.0
      %438 = vmatprep.subr.mxu0 0.0
      %439 = vmatpush1.msra.mxu0 0.0
      %440 = vmatprep.mubr.f32.mxu0 0.0
      %v441 = vand.u32 %v220, 4294901760
      %v442 = vsub.f32 %v220, %v441
      %443 = vmatmul.mubr.f32.gmra.mrb[0].mxu0 %v442
      %v444 = vpop.f32.mrb[0].mxu0
      %v445 = vadd.f32 %v371, %v444
      %v446 = vpop.f32.mrb[0].mxu0
      %447 = vdwg.mxu0
      %448 = vmatprep.subr.mxu0 0.0
      %v449 = vand.u32 %v211, 4294901760
      %450 = vmatpush1.msra.mxu0 %v449
      %451 = vmatprep.subr.mxu0 0.0
      %452 = vmatpush1.msra.mxu0 0.0
      %453 = vmatprep.subr.mxu0 0.0
      %454 = vmatpush1.msra.mxu0 0.0
      %455 = vmatprep.subr.mxu0 0.0
      %456 = vmatpush1.msra.mxu0 0.0
      %457 = vmatprep.subr.mxu0 0.0
      %458 = vmatpush1.msra.mxu0 0.0
      %459 = vmatprep.subr.mxu0 0.0
      %460 = vmatpush1.msra.mxu0 0.0
      %461 = vmatprep.subr.mxu0 0.0
      %462 = vmatpush1.msra.mxu0 0.0
      %463 = vmatprep.subr.mxu0 0.0
      %464 = vmatpush1.msra.mxu0 0.0
      %465 = vmatprep.subr.mxu0 0.0
      %466 = vmatpush1.msra.mxu0 0.0
      %467 = vmatprep.subr.mxu0 0.0
      %468 = vmatpush1.msra.mxu0 0.0
      %469 = vmatprep.subr.mxu0 0.0
      %470 = vmatpush1.msra.mxu0 0.0
      %471 = vmatprep.subr.mxu0 0.0
      %472 = vmatpush1.msra.mxu0 0.0
      %473 = vmatprep.subr.mxu0 0.0
      %474 = vmatpush1.msra.mxu0 0.0
      %475 = vmatprep.subr.mxu0 0.0
      %476 = vmatpush1.msra.mxu0 0.0
      %477 = vmatprep.subr.mxu0 0.0
      %478 = vmatpush1.msra.mxu0 0.0
      %479 = vmatprep.subr.mxu0 0.0
      %480 = vmatpush1.msra.mxu0 0.0
      %481 = vmatprep.subr.mxu0 0.0
      %482 = vmatpush1.msra.mxu0 0.0
      %483 = vmatprep.subr.mxu0 0.0
      %484 = vmatpush1.msra.mxu0 0.0
      %485 = vmatprep.subr.mxu0 0.0
      %486 = vmatpush1.msra.mxu0 0.0
      %487 = vmatprep.subr.mxu0 0.0
      %488 = vmatpush1.msra.mxu0 0.0
      %489 = vmatprep.subr.mxu0 0.0
      %490 = vmatpush1.msra.mxu0 0.0
      %491 = vmatprep.subr.mxu0 0.0
      %492 = vmatpush1.msra.mxu0 0.0
      %493 = vmatprep.subr.mxu0 0.0
      %494 = vmatpush1.msra.mxu0 0.0
      %495 = vmatprep.subr.mxu0 0.0
      %496 = vmatpush1.msra.mxu0 0.0
      %497 = vmatprep.subr.mxu0 0.0
      %498 = vmatpush1.msra.mxu0 0.0
      %499 = vmatprep.subr.mxu0 0.0
      %500 = vmatpush1.msra.mxu0 0.0
      %501 = vmatprep.subr.mxu0 0.0
      %502 = vmatpush1.msra.mxu0 0.0
      %503 = vmatprep.subr.mxu0 0.0
      %504 = vmatpush1.msra.mxu0 0.0
      %505 = vmatprep.subr.mxu0 0.0
      %506 = vmatpush1.msra.mxu0 0.0
      %507 = vmatprep.subr.mxu0 0.0
      %508 = vmatpush1.msra.mxu0 0.0
      %509 = vmatprep.subr.mxu0 0.0
      %510 = vmatpush1.msra.mxu0 0.0
      %511 = vmatprep.subr.mxu0 0.0
      %512 = vmatpush1.msra.mxu0 0.0
      %513 = vmatprep.mubr.f32.mxu0 0.0
      %v514 = vand.u32 %v220, 4294901760
      %v515 = vsub.f32 %v220, %v514
      %v516 = vand.u32 %v515, 4294901760
      %517 = vmatmul.mubr.f32.gmra.mrb[0].mxu0 %v516
      %v518 = vpop.f32.mrb[0].mxu0
      %v519 = vadd.f32 %v445, %v518
      %v520 = vpop.f32.mrb[0].mxu0
      %521 = vdwg.mxu0
      %522 = vmatprep.subr.mxu0 0.0
      %v523 = vand.u32 %v211, 4294901760
      %v524 = vsub.f32 %v211, %v523
      %v525 = vand.u32 %v524, 4294901760
      %526 = vmatpush1.msra.mxu0 %v525
      %527 = vmatprep.subr.mxu0 0.0
      %528 = vmatpush1.msra.mxu0 0.0
      %529 = vmatprep.subr.mxu0 0.0
      %530 = vmatpush1.msra.mxu0 0.0
      %531 = vmatprep.subr.mxu0 0.0
      %532 = vmatpush1.msra.mxu0 0.0
      %533 = vmatprep.subr.mxu0 0.0
      %534 = vmatpush1.msra.mxu0 0.0
      %535 = vmatprep.subr.mxu0 0.0
      %536 = vmatpush1.msra.mxu0 0.0
      %537 = vmatprep.subr.mxu0 0.0
      %538 = vmatpush1.msra.mxu0 0.0
      %539 = vmatprep.subr.mxu0 0.0
      %540 = vmatpush1.msra.mxu0 0.0
      %541 = vmatprep.subr.mxu0 0.0
      %542 = vmatpush1.msra.mxu0 0.0
      %543 = vmatprep.subr.mxu0 0.0
      %544 = vmatpush1.msra.mxu0 0.0
      %545 = vmatprep.subr.mxu0 0.0
      %546 = vmatpush1.msra.mxu0 0.0
      %547 = vmatprep.subr.mxu0 0.0
      %548 = vmatpush1.msra.mxu0 0.0
      %549 = vmatprep.subr.mxu0 0.0
      %550 = vmatpush1.msra.mxu0 0.0
      %551 = vmatprep.subr.mxu0 0.0
      %552 = vmatpush1.msra.mxu0 0.0
      %553 = vmatprep.subr.mxu0 0.0
      %554 = vmatpush1.msra.mxu0 0.0
      %555 = vmatprep.subr.mxu0 0.0
      %556 = vmatpush1.msra.mxu0 0.0
      %557 = vmatprep.subr.mxu0 0.0
      %558 = vmatpush1.msra.mxu0 0.0
      %559 = vmatprep.subr.mxu0 0.0
      %560 = vmatpush1.msra.mxu0 0.0
      %561 = vmatprep.subr.mxu0 0.0
      %562 = vmatpush1.msra.mxu0 0.0
      %563 = vmatprep.subr.mxu0 0.0
      %564 = vmatpush1.msra.mxu0 0.0
      %565 = vmatprep.subr.mxu0 0.0
      %566 = vmatpush1.msra.mxu0 0.0
      %567 = vmatprep.subr.mxu0 0.0
      %568 = vmatpush1.msra.mxu0 0.0
      %569 = vmatprep.subr.mxu0 0.0
      %570 = vmatpush1.msra.mxu0 0.0
      %571 = vmatprep.subr.mxu0 0.0
      %572 = vmatpush1.msra.mxu0 0.0
      %573 = vmatprep.subr.mxu0 0.0
      %574 = vmatpush1.msra.mxu0 0.0
      %575 = vmatprep.subr.mxu0 0.0
      %576 = vmatpush1.msra.mxu0 0.0
      %577 = vmatprep.subr.mxu0 0.0
      %578 = vmatpush1.msra.mxu0 0.0
      %579 = vmatprep.subr.mxu0 0.0
      %580 = vmatpush1.msra.mxu0 0.0
      %581 = vmatprep.subr.mxu0 0.0
      %582 = vmatpush1.msra.mxu0 0.0
      %583 = vmatprep.subr.mxu0 0.0
      %584 = vmatpush1.msra.mxu0 0.0
      %585 = vmatprep.subr.mxu0 0.0
      %586 = vmatpush1.msra.mxu0 0.0
      %587 = vmatprep.subr.mxu0 0.0
      %588 = vmatpush1.msra.mxu0 0.0
      %589 = vmatprep.mubr.f32.mxu0 0.0
      %v590 = vand.u32 %v220, 4294901760
      %591 = vmatmul.mubr.f32.gmra.mrb[0].mxu0 %v590
      %v592 = vpop.f32.mrb[0].mxu0
      %v593 = vadd.f32 %v519, %v592
      %v594 = vpop.f32.mrb[0].mxu0
      %595 = vdwg.mxu0
      %596 = vmatprep.subr.mxu0 0.0
      %v597 = vand.u32 %v211, 4294901760
      %598 = vmatpush1.msra.mxu0 %v597
      %599 = vmatprep.subr.mxu0 0.0
      %600 = vmatpush1.msra.mxu0 0.0
      %601 = vmatprep.subr.mxu0 0.0
      %602 = vmatpush1.msra.mxu0 0.0
      %603 = vmatprep.subr.mxu0 0.0
      %604 = vmatpush1.msra.mxu0 0.0
      %605 = vmatprep.subr.mxu0 0.0
      %606 = vmatpush1.msra.mxu0 0.0
      %607 = vmatprep.subr.mxu0 0.0
      %608 = vmatpush1.msra.mxu0 0.0
      %609 = vmatprep.subr.mxu0 0.0
      %610 = vmatpush1.msra.mxu0 0.0
      %611 = vmatprep.subr.mxu0 0.0
      %612 = vmatpush1.msra.mxu0 0.0
      %613 = vmatprep.subr.mxu0 0.0
      %614 = vmatpush1.msra.mxu0 0.0
      %615 = vmatprep.subr.mxu0 0.0
      %616 = vmatpush1.msra.mxu0 0.0
      %617 = vmatprep.subr.mxu0 0.0
      %618 = vmatpush1.msra.mxu0 0.0
      %619 = vmatprep.subr.mxu0 0.0
      %620 = vmatpush1.msra.mxu0 0.0
      %621 = vmatprep.subr.mxu0 0.0
      %622 = vmatpush1.msra.mxu0 0.0
      %623 = vmatprep.subr.mxu0 0.0
      %624 = vmatpush1.msra.mxu0 0.0
      %625 = vmatprep.subr.mxu0 0.0
      %626 = vmatpush1.msra.mxu0 0.0
      %627 = vmatprep.subr.mxu0 0.0
      %628 = vmatpush1.msra.mxu0 0.0
      %629 = vmatprep.subr.mxu0 0.0
      %630 = vmatpush1.msra.mxu0 0.0
      %631 = vmatprep.subr.mxu0 0.0
      %632 = vmatpush1.msra.mxu0 0.0
      %633 = vmatprep.subr.mxu0 0.0
      %634 = vmatpush1.msra.mxu0 0.0
      %635 = vmatprep.subr.mxu0 0.0
      %636 = vmatpush1.msra.mxu0 0.0
      %637 = vmatprep.subr.mxu0 0.0
      %638 = vmatpush1.msra.mxu0 0.0
      %639 = vmatprep.subr.mxu0 0.0
      %640 = vmatpush1.msra.mxu0 0.0
      %641 = vmatprep.subr.mxu0 0.0
      %642 = vmatpush1.msra.mxu0 0.0
      %643 = vmatprep.subr.mxu0 0.0
      %644 = vmatpush1.msra.mxu0 0.0
      %645 = vmatprep.subr.mxu0 0.0
      %646 = vmatpush1.msra.mxu0 0.0
      %647 = vmatprep.subr.mxu0 0.0
      %648 = vmatpush1.msra.mxu0 0.0
      %649 = vmatprep.subr.mxu0 0.0
      %650 = vmatpush1.msra.mxu0 0.0
      %651 = vmatprep.subr.mxu0 0.0
      %652 = vmatpush1.msra.mxu0 0.0
      %653 = vmatprep.subr.mxu0 0.0
      %654 = vmatpush1.msra.mxu0 0.0
      %655 = vmatprep.subr.mxu0 0.0
      %656 = vmatpush1.msra.mxu0 0.0
      %657 = vmatprep.subr.mxu0 0.0
      %658 = vmatpush1.msra.mxu0 0.0
      %659 = vmatprep.subr.mxu0 0.0
      %660 = vmatpush1.msra.mxu0 0.0
      %661 = vmatprep.mubr.f32.mxu0 0.0
      %v662 = vand.u32 %v220, 4294901760
      %663 = vmatmul.mubr.f32.gmra.mrb[0].mxu0 %v662
      %v664 = vpop.f32.mrb[0].mxu0
      %v665 = vadd.f32 %v593, %v664
      %v666 = vpop.f32.mrb[0].mxu0
      %667 = vdwg.mxu0
      %v668 = vld [vmem:[%s205] sm:$0xff]
      %v669 = vadd.f32 %v665, %v668
      %670 = vst [vmem:[%s209] sm:$0xff] %v669
      %p671 = scmp.lt.s32.totalorder %s15, 3
      %s672 = scalar_select %p671, %s15, 3
      %s673 = smul.addr %s672, 8
      %s674 = scalar_lea.vmem %s4, %s673
      // Predicated region
      $region37: #{fourier_shift_forward.3} parent=35 // pred_check
        %p675 = pneg %p127
      $region38: #{fourier_shift_forward.3} parent=35 // pred_check_branch
        %677 = sbr.rel (%p675) target = $region40
      $region39: #{fourier_shift_forward.3} parent=35 // pred_region
        _
      $region40: #{fourier_shift_forward.3} parent=35 // pred_fallthru
        _
    $region36: #{fourier_shift_forward.3} parent=5 // pred_fallthru
      _
    %p678 = scmp.le.s32.totalorder 2, %s10
    // Predicated region
    $region41: #{fourier_shift_forward.3} parent=5 // pred_check
      %p679 = pneg %p678
    $region42: #{fourier_shift_forward.3} parent=5 // pred_check_branch
      %681 = sbr.rel (%p679) target = $region44
    $region43: #{fourier_shift_forward.3} parent=5 // pred_region
      %s682 = ssub.s32 %s10, 2
      // Predicated region
      $region45: #{fourier_shift_forward.3} parent=43 // pred_check
        %p683 = pneg %p133
      $region46: #{fourier_shift_forward.3} parent=43 // pred_check_branch
        %685 = sbr.rel (%p683) target = $region48
      $region47: #{fourier_shift_forward.3} parent=43 // pred_region
        %p686 = scmp.lt.s32.totalorder %s16, 3
        %s687 = scalar_select %p686, %s16, 3
        %s688 = smul.addr %s687, 8
        %s689 = scalar_lea.vmem %s4, %s688
      $region48: #{fourier_shift_forward.3} parent=43 // pred_fallthru
        _
    $region44: #{fourier_shift_forward.3} parent=5 // pred_fallthru
      _
  $region6: #{fourier_shift_forward.3} parent=0 // loop_footer
    %s14 = sadd.s32 1, %s10
  $region7: #{fourier_shift_forward.3} parent=0 // loop_footer_branch
    %9 = sbr.rel target = $region3
  $region8: #{fourier_shift_forward.3} parent=0 // loop_exit
    _

</llo_original>
